<compile_context>
chip_gen: v7x
topology: tpu7x:2x2x1
jax: 0.10.0
libtpu: 0.0.40
codegen_flags: <defaults>
</compile_context>

<pallas_src>
import functools

import jax
import jax.numpy as jnp
from jax.experimental import pallas as pl
from jax.experimental.pallas import tpu as pltpu


def _round_up(x, m):
    return ((x + m - 1) // m) * m


def _pad2(a, rows, cols):
    return jnp.pad(a, ((0, rows - a.shape[0]), (0, cols - a.shape[1])))


# ----------------------------------------------------------------------------
# Kernel 1: tile-skipped GIN aggregation + MLP + ReLU + partial BN moments.
# ----------------------------------------------------------------------------
def _gin_aggr_mlp_kernel(cols_ref, cnt_ref, mask_ref, a_ref, x_ref,
                         w1_ref, b1_ref, w2_ref, b2_ref,
                         z_ref, stats_ref, acc_ref, *, nt_k):
    # All pl.program_id calls stay at the top level of the kernel (never
    # inside a pl.when body) so the kernel also lowers in interpret mode.
    i = pl.program_id(0)
    j = pl.program_id(1)
    valid = j < cnt_ref[i]            # nonzero-A-tile gate (block-diag skip)

    @pl.when(j == 0)
    def _():
        acc_ref[...] = jnp.zeros_like(acc_ref)

    @pl.when(valid)
    def _():
        # (A + I) @ x over nonzero source tiles only; bf16 MXU, f32 acc.
        acc_ref[...] += jnp.dot(a_ref[...], x_ref[...],
                                preferred_element_type=jnp.float32)

    @pl.when(j == nt_k - 1)
    def _():
        aggr = acc_ref[...].astype(jnp.bfloat16)
        # MLP: Linear -> ReLU -> Linear, bf16 operands, f32 accumulate/bias.
        h = jnp.dot(aggr, w1_ref[...],
                    preferred_element_type=jnp.float32) + b1_ref[...]
        h = jnp.maximum(h, 0.0).astype(jnp.bfloat16)
        h = jnp.dot(h, w2_ref[...],
                    preferred_element_type=jnp.float32) + b2_ref[...]
        z = jnp.maximum(h, 0.0) * mask_ref[...]   # zero padded node rows
        z_ref[...] = z
        # Partial BatchNorm1d moments (masked rows contribute exactly 0).
        stats_ref[0:1, :] = jnp.sum(z, axis=0, keepdims=True)
        stats_ref[1:2, :] = jnp.sum(z * z, axis=0, keepdims=True)
        # rows 2..7 of the stats block are sublane-alignment padding (unread).


def gin_aggr_mlp(cols_flat, cnt, mask, adj_bf16, x_bf16, w1, b1, w2, b2, *,
                 tm, tk):
    np_ = adj_bf16.shape[0]
    dp = x_bf16.shape[1]
    hp = w1.shape[1]
    nt_i = np_ // tm
    nt_k = np_ // tk

    flops = 2 * np_ * np_ * dp + 2 * np_ * dp * hp + 2 * np_ * hp * hp
    bytes_acc = (np_ * np_ * 2 + nt_i * np_ * dp * 2 + np_ * hp * 4
                 + (dp + hp) * hp * 2)

    kernel = functools.partial(_gin_aggr_mlp_kernel, nt_k=nt_k)
    return pl.pallas_call(
        kernel,
        out_shape=(jax.ShapeDtypeStruct((np_, hp), jnp.float32),
                   jax.ShapeDtypeStruct((nt_i * 8, hp), jnp.float32)),
        grid_spec=pltpu.PrefetchScalarGridSpec(
            num_scalar_prefetch=2,                 # cols_flat, cnt -> SMEM
            grid=(nt_i, nt_k),                     # reduction axis last
            in_specs=[
                pl.BlockSpec((tm, 1), lambda i, j, cols, cnt: (i, 0)),  # mask
                pl.BlockSpec((tm, tk),                                  # A
                             lambda i, j, cols, cnt: (i, cols[i * nt_k + j])),
                pl.BlockSpec((tk, dp),                                  # x
                             lambda i, j, cols, cnt: (cols[i * nt_k + j], 0)),
                pl.BlockSpec((dp, hp), lambda i, j, cols, cnt: (0, 0)),  # W1
                pl.BlockSpec((1, hp), lambda i, j, cols, cnt: (0, 0)),   # b1
                pl.BlockSpec((hp, hp), lambda i, j, cols, cnt: (0, 0)),  # W2
                pl.BlockSpec((1, hp), lambda i, j, cols, cnt: (0, 0)),   # b2
            ],
            out_specs=[
                pl.BlockSpec((tm, hp), lambda i, j, cols, cnt: (i, 0)),  # z
                pl.BlockSpec((8, hp), lambda i, j, cols, cnt: (i, 0)),   # BN
            ],
            scratch_shapes=[pltpu.VMEM((tm, dp), jnp.float32)],
        ),
        compiler_params=pltpu.CompilerParams(
            dimension_semantics=("parallel", "arbitrary"),   # megacore on i
            vmem_limit_bytes=32 * 1024 * 1024),
        cost_estimate=pl.CostEstimate(flops=flops, transcendentals=0,
                                      bytes_accessed=bytes_acc),
    )(cols_flat, cnt, mask, adj_bf16, x_bf16, w1, b1, w2, b2)


# ----------------------------------------------------------------------------
# Kernel 2: folded BatchNorm affine + fused global_add_pool.
# ----------------------------------------------------------------------------
def _bn_pool_kernel(z_ref, scale_ref, shift_ref, p_ref, zout_ref, g_ref):
    # Folded BN (scale = gamma*rsqrt(var+eps), shift = beta - mean*scale).
    zn = (z_ref[...] * scale_ref[...] + shift_ref[...]).astype(jnp.bfloat16)
    zout_ref[...] = zn

    @pl.when(pl.program_id(0) == 0)
    def _():
        g_ref[...] = jnp.zeros_like(g_ref)

    # global_add_pool as an accumulated matmul over node tiles; padded node
    # columns of P are zero so padded rows never leak into g.
    g_ref[...] += jnp.dot(p_ref[...], zn, preferred_element_type=jnp.float32)


def bn_pool(z_pre, scale, shift, pool_bf16, *, tm):
    np_, hp = z_pre.shape
    gp = pool_bf16.shape[0]
    nt = np_ // tm

    flops = 2 * gp * np_ * hp + 2 * np_ * hp
    bytes_acc = np_ * hp * (4 + 2) + gp * np_ * 2 + gp * hp * 4

    return pl.pallas_call(
        _bn_pool_kernel,
        out_shape=(jax.ShapeDtypeStruct((np_, hp), jnp.bfloat16),
                   jax.ShapeDtypeStruct((gp, hp), jnp.float32)),
        grid_spec=pltpu.PrefetchScalarGridSpec(
            num_scalar_prefetch=0,
            grid=(nt,),
            in_specs=[
                pl.BlockSpec((tm, hp), lambda i: (i, 0)),   # z (pre-BN, f32)
                pl.BlockSpec((1, hp), lambda i: (0, 0)),    # scale
                pl.BlockSpec((1, hp), lambda i: (0, 0)),    # shift
                pl.BlockSpec((gp, tm), lambda i: (0, i)),   # pooling matrix
            ],
            out_specs=[
                pl.BlockSpec((tm, hp), lambda i: (i, 0)),   # z_bn (bf16)
                pl.BlockSpec((gp, hp), lambda i: (0, 0)),   # g (accumulated)
            ],
        ),
        compiler_params=pltpu.CompilerParams(
            dimension_semantics=("arbitrary",),   # g accumulates across tiles
            vmem_limit_bytes=32 * 1024 * 1024),
        cost_estimate=pl.CostEstimate(flops=flops, transcendentals=0,
                                      bytes_accessed=bytes_acc),
    )(z_pre, scale, shift, pool_bf16)


# ----------------------------------------------------------------------------
# Parameter init (matches PyTorch nn.Linear / nn.BatchNorm1d defaults).
# ----------------------------------------------------------------------------
def init_gconv_params(key, input_dim, hidden_dim, num_layers):
    params = []
    for i in range(num_layers):
        d_in = input_dim if i == 0 else hidden_dim
        key, k1, k2, k3, k4 = jax.random.split(key, 5)
        lim1 = 1.0 / jnp.sqrt(d_in)
        lim2 = 1.0 / jnp.sqrt(hidden_dim)
        params.append(dict(
            w1=jax.random.uniform(k1, (d_in, hidden_dim), jnp.float32, -lim1, lim1),
            b1=jax.random.uniform(k2, (1, hidden_dim), jnp.float32, -lim1, lim1),
            w2=jax.random.uniform(k3, (hidden_dim, hidden_dim), jnp.float32, -lim2, lim2),
            b2=jax.random.uniform(k4, (1, hidden_dim), jnp.float32, -lim2, lim2),
            gamma=jnp.ones((1, hidden_dim), jnp.float32),
            beta=jnp.zeros((1, hidden_dim), jnp.float32),
        ))
    return params


# ----------------------------------------------------------------------------
# GConv forward (padding / adjacency / tile tables / concat are plain-JAX glue)
# ----------------------------------------------------------------------------
@functools.partial(jax.jit, static_argnames=("num_graphs",))
def gconv_forward(params, x, edge_index, batch, num_graphs):
    n, din = x.shape
    hidden = params[0]["w1"].shape[1]

    # Rectangular A tiles (tm rows x tk cols): a large row tile amortizes x
    # re-reads and per-step overhead, a modest tk keeps np_ padding small.
    # VMEM at (1024, 256) bf16 is a few MiB double-buffered -- fine on every
    # generation including v7x's 64 MiB.  Sweep tm in 1024..2048 for big jobs.
    tk = min(_round_up(n, 128), 256)
    tm = min(_round_up(n, tk), 1024)          # multiple of tk by construction
    np_ = _round_up(n, tm)
    dp = _round_up(din, 128)                  # lane-dense feature dims
    hp = _round_up(hidden, 128)
    gp = _round_up(num_graphs, 8)
    nt_i = np_ // tm
    nt_k = np_ // tk

    # Dense adjacency A[dst, src] += 1 plus the GIN eps=0 self term on REAL
    # rows only (no jnp.eye materialization; padded rows/cols stay all-zero).
    src, dst = edge_index[0], edge_index[1]
    adj = jnp.zeros((np_, np_), jnp.float32).at[dst, src].add(1.0)
    diag = jnp.arange(n)
    adj = adj.at[diag, diag].add(1.0)
    adj_bf16 = adj.astype(jnp.bfloat16)       # exact for small integer counts

    # Per-row-tile table of nonzero source tiles (block-diagonal skipping).
    # cols[i, :cnt[i]] lists nonzero A tiles (ascending); the remaining slots
    # are clamped to the last valid entry so the pipeline keeps reusing the
    # already-resident block (no fresh DMA), and pl.when skips the matmul.
    tile_nz = (adj.reshape(nt_i, tm, nt_k, tk) != 0).any(axis=(1, 3))
    cnt = jnp.sum(tile_nz, axis=1).astype(jnp.int32)
    order = jnp.argsort(jnp.where(tile_nz, 0, 1), axis=1).astype(jnp.int32)
    last = order[jnp.arange(nt_i), jnp.maximum(cnt - 1, 0)]
    jj = jnp.arange(nt_k, dtype=jnp.int32)[None, :]
    cols = jnp.where(jj < cnt[:, None], order, last[:, None]).astype(jnp.int32)
    cols_flat = cols.reshape(-1)

    # Row-validity mask: padded node rows excluded from BN statistics.
    mask = (jnp.arange(np_) < n).astype(jnp.float32).reshape(np_, 1)

    # One-hot pooling matrix; padded nodes get batch id -1 -> all-zero column.
    batch_pad = jnp.concatenate(
        [batch, jnp.full((np_ - n,), -1, dtype=batch.dtype)])
    pool_bf16 = (batch_pad[None, :] == jnp.arange(gp)[:, None]).astype(jnp.bfloat16)

    z = _pad2(x, np_, dp).astype(jnp.bfloat16)    # activations stay bf16
    zs, gs = [], []
    for p in params:
        d_in_p = z.shape[1]
        w1p = _pad2(p["w1"], d_in_p, hp).astype(jnp.bfloat16)
        b1p = _pad2(p["b1"], 1, hp)
        w2p = _pad2(p["w2"], hp, hp).astype(jnp.bfloat16)
        b2p = _pad2(p["b2"], 1, hp)
        gammap = _pad2(p["gamma"], 1, hp)
        betap = _pad2(p["beta"], 1, hp)

        z_pre, stats_raw = gin_aggr_mlp(cols_flat, cnt, mask, adj_bf16, z,
                                        w1p, b1p, w2p, b2p, tm=tm, tk=tk)

        # Tiny cross-tile reduce of the masked moments -> folded BN affine.
        stats = stats_raw.reshape(nt_i, 8, hp)
        s = jnp.sum(stats[:, 0, :], axis=0)
        s2 = jnp.sum(stats[:, 1, :], axis=0)
        mean = (s / n)[None, :]
        var = jnp.maximum((s2 / n)[None, :] - mean * mean, 0.0)
        scale = gammap * jax.lax.rsqrt(var + 1e-5)
        shift = betap - mean * scale

        z_bn, g = bn_pool(z_pre, scale, shift, pool_bf16, tm=tm)

        zs.append(z_bn[:n, :hidden].astype(jnp.float32))
        gs.append(g[:num_graphs, :hidden])
        z = z_bn                          # next layer input (bf16, lane-dense)

    return jnp.concatenate(zs, axis=1), jnp.concatenate(gs, axis=1)


# ----------------------------------------------------------------------------
# Pure-JAX reference mirroring the kernel's bf16 precision policy (the PyTorch
# module is f32; bf16 activations/weights are an intentional TPU choice).
# ----------------------------------------------------------------------------
def reference_forward(params, x, edge_index, batch, num_graphs):
    n = x.shape[0]
    adj = jnp.zeros((n, n), jnp.float32).at[edge_index[1], edge_index[0]].add(1.0)
    adj = adj.at[jnp.arange(n), jnp.arange(n)].add(1.0).astype(jnp.bfloat16)
    pool = (batch[None, :] == jnp.arange(num_graphs)[:, None]).astype(jnp.bfloat16)
    z = x.astype(jnp.bfloat16)
    zs, gs = [], []
    for p in params:
        aggr = jnp.dot(adj, z, preferred_element_type=jnp.float32)
        h = jnp.dot(aggr.astype(jnp.bfloat16), p["w1"].astype(jnp.bfloat16),
                    preferred_element_type=jnp.float32) + p["b1"]
        h = jnp.maximum(h, 0.0)
        h = jnp.dot(h.astype(jnp.bfloat16), p["w2"].astype(jnp.bfloat16),
                    preferred_element_type=jnp.float32) + p["b2"]
        zz = jnp.maximum(h, 0.0)
        mean = jnp.mean(zz, axis=0, keepdims=True)
        var = jnp.maximum(jnp.mean(zz * zz, axis=0, keepdims=True) - mean * mean, 0.0)
        scale = p["gamma"] * jax.lax.rsqrt(var + 1e-5)
        zbn = (zz * scale + (p["beta"] - mean * scale)).astype(jnp.bfloat16)
        zs.append(zbn.astype(jnp.float32))
        gs.append(jnp.dot(pool, zbn, preferred_element_type=jnp.float32))
        z = zbn
    return jnp.concatenate(zs, axis=1), jnp.concatenate(gs, axis=1)


# ----------------------------------------------------------------------------
if __name__ == "__main__":
    key = jax.random.PRNGKey(0)
    k_par, k_x, k_e = jax.random.split(key, 3)

    num_nodes = 16
    input_dim = 8
    hidden_dim = 32
    num_layers = 3
    num_graphs = 2
    num_edges = 40

    params = init_gconv_params(k_par, input_dim, hidden_dim, num_layers)

    x = jax.random.normal(k_x, (num_nodes, input_dim), jnp.float32)
    edge_index = jax.random.randint(k_e, (2, num_edges), 0, num_nodes, jnp.int32)
    batch = jnp.concatenate([
        jnp.zeros((num_nodes // 2,), jnp.int32),
        jnp.ones((num_nodes - num_nodes // 2,), jnp.int32),
    ])

    z, g = gconv_forward(params, x, edge_index, batch, num_graphs)
    jax.block_until_ready((z, g))

    assert z.shape == (num_nodes, hidden_dim * num_layers)
    assert g.shape == (num_graphs, hidden_dim * num_layers)

    # Reference mirrors the kernel's bf16 precision policy, so only tiny
    # accumulation-order differences remain; keep a loose tolerance anyway.
    z_ref, g_ref = reference_forward(params, x, edge_index, batch, num_graphs)
    assert jnp.allclose(z, z_ref, atol=0.1, rtol=0.1), \
        float(jnp.max(jnp.abs(z - z_ref)))
    assert jnp.allclose(g, g_ref, atol=0.1, rtol=0.1), \
        float(jnp.max(jnp.abs(g - g_ref)))

    print("KERNEL_OK")
</pallas_src>

<mosaic_0001>
module attributes {stable_mosaic.version = 11 : i64} {
  func.func private @main(%arg0: i32) attributes {dimension_semantics = [#tpu.dimension_semantics<core_parallel>], iteration_bounds = array<i64: 2>, tpu.core_type = #tpu.core_type<sc_scalar_subcore>, window_params = []} {
    return
  }
}

module attributes {stable_mosaic.version = 11 : i64} {
  func.func private @main(%arg0: i32) attributes {dimension_semantics = [#tpu.dimension_semantics<core_parallel>], iteration_bounds = array<i64: 2>, tpu.core_type = #tpu.core_type<sc_scalar_subcore>, window_params = []} {
    return
  }
}

module attributes {stable_mosaic.version = 11 : i64} {
  func.func @_gin_aggr_mlp_kernel(%arg0: i32, %arg1: i32, %arg2: memref<1xi32, #tpu.memory_space<smem>>, %arg3: memref<1xi32, #tpu.memory_space<smem>>, %arg4: memref<128x1xf32, #tpu.memory_space<vmem>>, %arg5: memref<128x128xbf16, #tpu.memory_space<vmem>>, %arg6: memref<128x128xbf16, #tpu.memory_space<vmem>>, %arg7: memref<128x128xbf16, #tpu.memory_space<vmem>>, %arg8: memref<1x128xf32, #tpu.memory_space<vmem>>, %arg9: memref<128x128xbf16, #tpu.memory_space<vmem>>, %arg10: memref<1x128xf32, #tpu.memory_space<vmem>>, %arg11: memref<128x128xf32, #tpu.memory_space<vmem>>, %arg12: memref<8x128xf32, #tpu.memory_space<vmem>>, %arg13: memref<128x128xf32, #tpu.memory_space<vmem>>) attributes {dimension_semantics = [#tpu.dimension_semantics<parallel>, #tpu.dimension_semantics<arbitrary>], iteration_bounds = array<i64: 1, 1>, scalar_prefetch = 2 : i64, scratch_operands = 1 : i64, tpu.core_type = #tpu.core_type<tc>, window_params = [{transform_indices = @transform_0, window_bounds = array<i64: 128, 1>}, {transform_indices = @transform_1, window_bounds = array<i64: 128, 128>}, {transform_indices = @transform_2, window_bounds = array<i64: 128, 128>}, {pipeline_mode = #tpu.pipeline_mode<synchronous>, transform_indices = @transform_3, window_bounds = array<i64: 128, 128>}, {pipeline_mode = #tpu.pipeline_mode<synchronous>, transform_indices = @transform_4, window_bounds = array<i64: 1, 128>}, {pipeline_mode = #tpu.pipeline_mode<synchronous>, transform_indices = @transform_5, window_bounds = array<i64: 128, 128>}, {pipeline_mode = #tpu.pipeline_mode<synchronous>, transform_indices = @transform_6, window_bounds = array<i64: 1, 128>}, {transform_indices = @transform_7, window_bounds = array<i64: 128, 128>}, {transform_indices = @transform_8, window_bounds = array<i64: 8, 128>}]} {
    %0 = arith.index_cast %arg0 : i32 to index
    %1 = memref.load %arg3[%0] : memref<1xi32, #tpu.memory_space<smem>>
    %2 = arith.cmpi slt, %arg1, %1 : i32
    %c0_i32 = arith.constant 0 : i32
    %3 = arith.cmpi eq, %arg1, %c0_i32 : i32
    %4 = arith.extui %3 : i1 to i32
    %c0_i32_0 = arith.constant 0 : i32
    %5 = arith.cmpi ne, %4, %c0_i32_0 : i32
    scf.if %5 {
      %cst = arith.constant 0.000000e+00 : f32
      %11 = vector.broadcast %cst : f32 to vector<128x128xf32>
      %c0 = arith.constant 0 : index
      %c0_4 = arith.constant 0 : index
      %12 = vector.load %arg13[%c0, %c0_4] : memref<128x128xf32, #tpu.memory_space<vmem>>, vector<128x128xf32>
      tpu.vector_store %arg13[%c0, %c0_4], %11 {strides = array<i32>} : memref<128x128xf32, #tpu.memory_space<vmem>>, vector<128x128xf32>,
    } else {
    }
    %6 = arith.extui %2 : i1 to i32
    %c0_i32_1 = arith.constant 0 : i32
    %7 = arith.cmpi ne, %6, %c0_i32_1 : i32
    scf.if %7 {
      %c0 = arith.constant 0 : index
      %c0_4 = arith.constant 0 : index
      %11 = vector.load %arg13[%c0, %c0_4] : memref<128x128xf32, #tpu.memory_space<vmem>>, vector<128x128xf32>
      %c0_5 = arith.constant 0 : index
      %c0_6 = arith.constant 0 : index
      %12 = vector.load %arg5[%c0_5, %c0_6] : memref<128x128xbf16, #tpu.memory_space<vmem>>, vector<128x128xbf16>
      %c0_7 = arith.constant 0 : index
      %c0_8 = arith.constant 0 : index
      %13 = vector.load %arg6[%c0_7, %c0_8] : memref<128x128xbf16, #tpu.memory_space<vmem>>, vector<128x128xbf16>
      %cst = arith.constant dense<0.000000e+00> : vector<128x128xf32>
      %14 = tpu.matmul %12, %13, %cst {dimension_numbers = #tpu.dot_dimension_numbers<[1], [0], [0], [1], [0, 0, 1, 1], [], []>} : vector<128x128xbf16>, vector<128x128xbf16>, vector<128x128xf32> -> vector<128x128xf32>
      %15 = arith.addf %11, %14 : vector<128x128xf32>
      %c0_9 = arith.constant 0 : index
      %c0_10 = arith.constant 0 : index
      %16 = vector.load %arg13[%c0_9, %c0_10] : memref<128x128xf32, #tpu.memory_space<vmem>>, vector<128x128xf32>
      tpu.vector_store %arg13[%c0_9, %c0_10], %15 {strides = array<i32>} : memref<128x128xf32, #tpu.memory_space<vmem>>, vector<128x128xf32>,
    } else {
    }
    %c0_i32_2 = arith.constant 0 : i32
    %8 = arith.cmpi eq, %arg1, %c0_i32_2 : i32
    %9 = arith.extui %8 : i1 to i32
    %c0_i32_3 = arith.constant 0 : i32
    %10 = arith.cmpi ne, %9, %c0_i32_3 : i32
    scf.if %10 {
      %c0 = arith.constant 0 : index
      %c0_4 = arith.constant 0 : index
      %11 = vector.load %arg13[%c0, %c0_4] : memref<128x128xf32, #tpu.memory_space<vmem>>, vector<128x128xf32>
      %12 = arith.truncf %11 : vector<128x128xf32> to vector<128x128xbf16>
      %c0_5 = arith.constant 0 : index
      %c0_6 = arith.constant 0 : index
      %13 = vector.load %arg7[%c0_5, %c0_6] : memref<128x128xbf16, #tpu.memory_space<vmem>>, vector<128x128xbf16>
      %cst = arith.constant dense<0.000000e+00> : vector<128x128xf32>
      %14 = tpu.matmul %12, %13, %cst {dimension_numbers = #tpu.dot_dimension_numbers<[1], [0], [0], [1], [0, 0, 1, 1], [], []>} : vector<128x128xbf16>, vector<128x128xbf16>, vector<128x128xf32> -> vector<128x128xf32>
      %c0_7 = arith.constant 0 : index
      %c0_8 = arith.constant 0 : index
      %15 = vector.load %arg8[%c0_7, %c0_8] : memref<1x128xf32, #tpu.memory_space<vmem>>, vector<1x128xf32>
      %16 = vector.broadcast %15 : vector<1x128xf32> to vector<128x128xf32>
      %17 = arith.addf %14, %16 : vector<128x128xf32>
      %cst_9 = arith.constant 0.000000e+00 : f32
      %18 = vector.broadcast %cst_9 : f32 to vector<128x128xf32>
      %19 = arith.maximumf %17, %18 : vector<128x128xf32>
      %20 = arith.truncf %19 : vector<128x128xf32> to vector<128x128xbf16>
      %c0_10 = arith.constant 0 : index
      %c0_11 = arith.constant 0 : index
      %21 = vector.load %arg9[%c0_10, %c0_11] : memref<128x128xbf16, #tpu.memory_space<vmem>>, vector<128x128xbf16>
      %cst_12 = arith.constant dense<0.000000e+00> : vector<128x128xf32>
      %22 = tpu.matmul %20, %21, %cst_12 {dimension_numbers = #tpu.dot_dimension_numbers<[1], [0], [0], [1], [0, 0, 1, 1], [], []>} : vector<128x128xbf16>, vector<128x128xbf16>, vector<128x128xf32> -> vector<128x128xf32>
      %c0_13 = arith.constant 0 : index
      %c0_14 = arith.constant 0 : index
      %23 = vector.load %arg10[%c0_13, %c0_14] : memref<1x128xf32, #tpu.memory_space<vmem>>, vector<1x128xf32>
      %24 = vector.broadcast %23 : vector<1x128xf32> to vector<128x128xf32>
      %25 = arith.addf %22, %24 : vector<128x128xf32>
      %cst_15 = arith.constant 0.000000e+00 : f32
      %26 = vector.broadcast %cst_15 : f32 to vector<128x128xf32>
      %27 = arith.maximumf %25, %26 : vector<128x128xf32>
      %c0_16 = arith.constant 0 : index
      %c0_17 = arith.constant 0 : index
      %28 = vector.load %arg4[%c0_16, %c0_17] : memref<128x1xf32, #tpu.memory_space<vmem>>, vector<128x1xf32>
      %29 = vector.broadcast %28 : vector<128x1xf32> to vector<128x128xf32>
      %30 = arith.mulf %27, %29 : vector<128x128xf32>
      %c0_18 = arith.constant 0 : index
      %c0_19 = arith.constant 0 : index
      %31 = vector.load %arg11[%c0_18, %c0_19] : memref<128x128xf32, #tpu.memory_space<vmem>>, vector<128x128xf32>
      tpu.vector_store %arg11[%c0_18, %c0_19], %30 {strides = array<i32>} : memref<128x128xf32, #tpu.memory_space<vmem>>, vector<128x128xf32>,
      %cst_20 = arith.constant dense<0.000000e+00> : vector<128xf32>
      %32 = vector.multi_reduction <add>, %30, %cst_20 [0] : vector<128x128xf32> to vector<128xf32>
      %33 = vector.shape_cast %32 : vector<128xf32> to vector<1x128xf32>
      %c0_21 = arith.constant 0 : index
      %c0_22 = arith.constant 0 : index
      %34 = vector.load %arg12[%c0_21, %c0_22] : memref<8x128xf32, #tpu.memory_space<vmem>>, vector<1x128xf32>
      tpu.vector_store %arg12[%c0_21, %c0_22], %33 {strides = array<i32>} : memref<8x128xf32, #tpu.memory_space<vmem>>, vector<1x128xf32>,
      %35 = arith.mulf %30, %30 : vector<128x128xf32>
      %cst_23 = arith.constant dense<0.000000e+00> : vector<128xf32>
      %36 = vector.multi_reduction <add>, %35, %cst_23 [0] : vector<128x128xf32> to vector<128xf32>
      %37 = vector.shape_cast %36 : vector<128xf32> to vector<1x128xf32>
      %c1 = arith.constant 1 : index
      %c0_24 = arith.constant 0 : index
      %38 = vector.load %arg12[%c1, %c0_24] : memref<8x128xf32, #tpu.memory_space<vmem>>, vector<1x128xf32>
      tpu.vector_store %arg12[%c1, %c0_24], %37 {strides = array<i32>} : memref<8x128xf32, #tpu.memory_space<vmem>>, vector<1x128xf32>,
    } else {
    }
    return
  }
  func.func @transform_0(%arg0: i32, %arg1: i32, %arg2: memref<1xi32, #tpu.memory_space<smem>>, %arg3: memref<1xi32, #tpu.memory_space<smem>>) -> (i32, i32) {
    %c0_i32 = arith.constant 0 : i32
    %c0_i32_0 = arith.constant 0 : i32
    return %arg0, %c0_i32 : i32, i32
  }
  func.func @transform_1(%arg0: i32, %arg1: i32, %arg2: memref<1xi32, #tpu.memory_space<smem>>, %arg3: memref<1xi32, #tpu.memory_space<smem>>) -> (i32, i32) {
    %c1_i32 = arith.constant 1 : i32
    %0 = arith.muli %arg0, %c1_i32 : i32
    %1 = arith.addi %0, %arg1 : i32
    %2 = arith.index_cast %1 : i32 to index
    %3 = memref.load %arg2[%2] : memref<1xi32, #tpu.memory_space<smem>>
    %c0_i32 = arith.constant 0 : i32
    return %arg0, %3 : i32, i32
  }
  func.func @transform_2(%arg0: i32, %arg1: i32, %arg2: memref<1xi32, #tpu.memory_space<smem>>, %arg3: memref<1xi32, #tpu.memory_space<smem>>) -> (i32, i32) {
    %c1_i32 = arith.constant 1 : i32
    %0 = arith.muli %arg0, %c1_i32 : i32
    %1 = arith.addi %0, %arg1 : i32
    %2 = arith.index_cast %1 : i32 to index
    %3 = memref.load %arg2[%2] : memref<1xi32, #tpu.memory_space<smem>>
    %c0_i32 = arith.constant 0 : i32
    %c0_i32_0 = arith.constant 0 : i32
    return %3, %c0_i32 : i32, i32
  }
  func.func @transform_3(%arg0: i32, %arg1: i32, %arg2: memref<1xi32, #tpu.memory_space<smem>>, %arg3: memref<1xi32, #tpu.memory_space<smem>>) -> (i32, i32) {
    %c0_i32 = arith.constant 0 : i32
    %c0_i32_0 = arith.constant 0 : i32
    %c0_i32_1 = arith.constant 0 : i32
    return %c0_i32, %c0_i32_0 : i32, i32
  }
  func.func @transform_4(%arg0: i32, %arg1: i32, %arg2: memref<1xi32, #tpu.memory_space<smem>>, %arg3: memref<1xi32, #tpu.memory_space<smem>>) -> (i32, i32) {
    %c0_i32 = arith.constant 0 : i32
    %c0_i32_0 = arith.constant 0 : i32
    %c0_i32_1 = arith.constant 0 : i32
    return %c0_i32, %c0_i32_0 : i32, i32
  }
  func.func @transform_5(%arg0: i32, %arg1: i32, %arg2: memref<1xi32, #tpu.memory_space<smem>>, %arg3: memref<1xi32, #tpu.memory_space<smem>>) -> (i32, i32) {
    %c0_i32 = arith.constant 0 : i32
    %c0_i32_0 = arith.constant 0 : i32
    %c0_i32_1 = arith.constant 0 : i32
    return %c0_i32, %c0_i32_0 : i32, i32
  }
  func.func @transform_6(%arg0: i32, %arg1: i32, %arg2: memref<1xi32, #tpu.memory_space<smem>>, %arg3: memref<1xi32, #tpu.memory_space<smem>>) -> (i32, i32) {
    %c0_i32 = arith.constant 0 : i32
    %c0_i32_0 = arith.constant 0 : i32
    %c0_i32_1 = arith.constant 0 : i32
    return %c0_i32, %c0_i32_0 : i32, i32
  }
  func.func @transform_7(%arg0: i32, %arg1: i32, %arg2: memref<1xi32, #tpu.memory_space<smem>>, %arg3: memref<1xi32, #tpu.memory_space<smem>>) -> (i32, i32) {
    %c0_i32 = arith.constant 0 : i32
    %c0_i32_0 = arith.constant 0 : i32
    return %arg0, %c0_i32 : i32, i32
  }
  func.func @transform_8(%arg0: i32, %arg1: i32, %arg2: memref<1xi32, #tpu.memory_space<smem>>, %arg3: memref<1xi32, #tpu.memory_space<smem>>) -> (i32, i32) {
    %c0_i32 = arith.constant 0 : i32
    %c0_i32_0 = arith.constant 0 : i32
    return %arg0, %c0_i32 : i32, i32
  }
}

module attributes {stable_mosaic.version = 11 : i64} {
  func.func @_bn_pool_kernel(%arg0: i32, %arg1: memref<128x128xf32, #tpu.memory_space<vmem>>, %arg2: memref<1x128xf32, #tpu.memory_space<vmem>>, %arg3: memref<1x128xf32, #tpu.memory_space<vmem>>, %arg4: memref<8x128xbf16, #tpu.memory_space<vmem>>, %arg5: memref<128x128xbf16, #tpu.memory_space<vmem>>, %arg6: memref<8x128xf32, #tpu.memory_space<vmem>>) attributes {dimension_semantics = [#tpu.dimension_semantics<arbitrary>], iteration_bounds = array<i64: 1>, scalar_prefetch = 0 : i64, scratch_operands = 0 : i64, tpu.core_type = #tpu.core_type<tc>, window_params = [{transform_indices = @transform_0, window_bounds = array<i64: 128, 128>}, {pipeline_mode = #tpu.pipeline_mode<synchronous>, transform_indices = @transform_1, window_bounds = array<i64: 1, 128>}, {pipeline_mode = #tpu.pipeline_mode<synchronous>, transform_indices = @transform_2, window_bounds = array<i64: 1, 128>}, {transform_indices = @transform_3, window_bounds = array<i64: 8, 128>}, {transform_indices = @transform_4, window_bounds = array<i64: 128, 128>}, {pipeline_mode = #tpu.pipeline_mode<synchronous>, transform_indices = @transform_5, window_bounds = array<i64: 8, 128>}]} {
    %c0 = arith.constant 0 : index
    %c0_0 = arith.constant 0 : index
    %0 = vector.load %arg1[%c0, %c0_0] : memref<128x128xf32, #tpu.memory_space<vmem>>, vector<128x128xf32>
    %c0_1 = arith.constant 0 : index
    %c0_2 = arith.constant 0 : index
    %1 = vector.load %arg2[%c0_1, %c0_2] : memref<1x128xf32, #tpu.memory_space<vmem>>, vector<1x128xf32>
    %2 = vector.broadcast %1 : vector<1x128xf32> to vector<128x128xf32>
    %3 = arith.mulf %0, %2 : vector<128x128xf32>
    %c0_3 = arith.constant 0 : index
    %c0_4 = arith.constant 0 : index
    %4 = vector.load %arg3[%c0_3, %c0_4] : memref<1x128xf32, #tpu.memory_space<vmem>>, vector<1x128xf32>
    %5 = vector.broadcast %4 : vector<1x128xf32> to vector<128x128xf32>
    %6 = arith.addf %3, %5 : vector<128x128xf32>
    %7 = arith.truncf %6 : vector<128x128xf32> to vector<128x128xbf16>
    %c0_5 = arith.constant 0 : index
    %c0_6 = arith.constant 0 : index
    %8 = vector.load %arg5[%c0_5, %c0_6] : memref<128x128xbf16, #tpu.memory_space<vmem>>, vector<128x128xbf16>
    tpu.vector_store %arg5[%c0_5, %c0_6], %7 {strides = array<i32>} : memref<128x128xbf16, #tpu.memory_space<vmem>>, vector<128x128xbf16>,
    %c0_i32 = arith.constant 0 : i32
    %9 = arith.cmpi eq, %arg0, %c0_i32 : i32
    %10 = arith.extui %9 : i1 to i32
    %c0_i32_7 = arith.constant 0 : i32
    %11 = arith.cmpi ne, %10, %c0_i32_7 : i32
    scf.if %11 {
      %cst_14 = arith.constant 0.000000e+00 : f32
      %17 = vector.broadcast %cst_14 : f32 to vector<8x128xf32>
      %c0_15 = arith.constant 0 : index
      %c0_16 = arith.constant 0 : index
      %18 = vector.load %arg6[%c0_15, %c0_16] : memref<8x128xf32, #tpu.memory_space<vmem>>, vector<8x128xf32>
      tpu.vector_store %arg6[%c0_15, %c0_16], %17 {strides = array<i32>} : memref<8x128xf32, #tpu.memory_space<vmem>>, vector<8x128xf32>,
    } else {
    }
    %c0_8 = arith.constant 0 : index
    %c0_9 = arith.constant 0 : index
    %12 = vector.load %arg6[%c0_8, %c0_9] : memref<8x128xf32, #tpu.memory_space<vmem>>, vector<8x128xf32>
    %c0_10 = arith.constant 0 : index
    %c0_11 = arith.constant 0 : index
    %13 = vector.load %arg4[%c0_10, %c0_11] : memref<8x128xbf16, #tpu.memory_space<vmem>>, vector<8x128xbf16>
    %cst = arith.constant dense<0.000000e+00> : vector<8x128xf32>
    %14 = tpu.matmul %13, %7, %cst {dimension_numbers = #tpu.dot_dimension_numbers<[1], [0], [0], [1], [0, 0, 1, 1], [], []>} : vector<8x128xbf16>, vector<128x128xbf16>, vector<8x128xf32> -> vector<8x128xf32>
    %15 = arith.addf %12, %14 : vector<8x128xf32>
    %c0_12 = arith.constant 0 : index
    %c0_13 = arith.constant 0 : index
    %16 = vector.load %arg6[%c0_12, %c0_13] : memref<8x128xf32, #tpu.memory_space<vmem>>, vector<8x128xf32>
    tpu.vector_store %arg6[%c0_12, %c0_13], %15 {strides = array<i32>} : memref<8x128xf32, #tpu.memory_space<vmem>>, vector<8x128xf32>,
    return
  }
  func.func @transform_0(%arg0: i32) -> (i32, i32) {
    %c0_i32 = arith.constant 0 : i32
    %c0_i32_0 = arith.constant 0 : i32
    return %arg0, %c0_i32 : i32, i32
  }
  func.func @transform_1(%arg0: i32) -> (i32, i32) {
    %c0_i32 = arith.constant 0 : i32
    %c0_i32_0 = arith.constant 0 : i32
    %c0_i32_1 = arith.constant 0 : i32
    return %c0_i32, %c0_i32_0 : i32, i32
  }
  func.func @transform_2(%arg0: i32) -> (i32, i32) {
    %c0_i32 = arith.constant 0 : i32
    %c0_i32_0 = arith.constant 0 : i32
    %c0_i32_1 = arith.constant 0 : i32
    return %c0_i32, %c0_i32_0 : i32, i32
  }
  func.func @transform_3(%arg0: i32) -> (i32, i32) {
    %c0_i32 = arith.constant 0 : i32
    %c0_i32_0 = arith.constant 0 : i32
    return %c0_i32, %arg0 : i32, i32
  }
  func.func @transform_4(%arg0: i32) -> (i32, i32) {
    %c0_i32 = arith.constant 0 : i32
    %c0_i32_0 = arith.constant 0 : i32
    return %arg0, %c0_i32 : i32, i32
  }
  func.func @transform_5(%arg0: i32) -> (i32, i32) {
    %c0_i32 = arith.constant 0 : i32
    %c0_i32_0 = arith.constant 0 : i32
    %c0_i32_1 = arith.constant 0 : i32
    return %c0_i32, %c0_i32_0 : i32, i32
  }
}

</mosaic_0001>

<llo_original>
// kernel: gconv_forward.7
$region0: #{gconv_forward.7}
  #allocation0 [shape = 'u32[]', space=smem, size = 0x4, offset = 0x4, fixed_abs, tag = 'smem constant byte address 0x4 - core index']
  #allocation1 [shape = 'u32[144,128]{1,0:T(1,128)}', space=vmem, size = 0x12000, scoped, tag = 'internal scratch']
  %s0 = inlined_call_operand.vmem [shape: f32[128,128], index: 0, kind: input, shape index: {}]
  %s1 = inlined_call_operand.vmem [shape: f32[1,128], index: 1, kind: input, shape index: {}]
  %s2 = inlined_call_operand.vmem [shape: f32[1,128], index: 2, kind: input, shape index: {}]
  %s3 = inlined_call_operand.vmem [shape: bf16[8,128], index: 3, kind: input, shape index: {}]
  %s4 = inlined_call_operand.vmem [shape: bf16[128,128], index: 4, kind: output, shape index: {0}]
  %s5 = inlined_call_operand.vmem [shape: f32[8,128], index: 5, kind: output, shape index: {1}]
  %6 = xla_tuple %s4, %s5
  %s7 = sld [smem:[#allocation0]]
  $region38: #{gconv_forward.7} parent=0
    _
  %s9 = ssub.s32 1, %s7
  %s10 = scalar_select 0, %s9, %s7
  // Predicated region
  $region2: #{gconv_forward.7} parent=0 // pred_check
    _
  $region3: #{gconv_forward.7} parent=0 // pred_check_branch
    %12 = sbr.rel (0) target = $region5
  $region4: #{gconv_forward.7} parent=0 // pred_region
    _
  $region5: #{gconv_forward.7} parent=0 // pred_fallthru
    _
  // Predicated region
  $region6: #{gconv_forward.7} parent=0 // pred_check
    _
  $region7: #{gconv_forward.7} parent=0 // pred_check_branch
    %14 = sbr.rel (0) target = $region9
  $region8: #{gconv_forward.7} parent=0 // pred_region
    _
  $region9: #{gconv_forward.7} parent=0 // pred_fallthru
    _
  // Predicated region
  $region10: #{gconv_forward.7} parent=0 // pred_check
    _
  $region11: #{gconv_forward.7} parent=0 // pred_check_branch
    %16 = sbr.rel (0) target = $region13
  $region12: #{gconv_forward.7} parent=0 // pred_region
    _
  $region13: #{gconv_forward.7} parent=0 // pred_fallthru
    _
  // Predicated region
  $region14: #{gconv_forward.7} parent=0 // pred_check
    _
  $region15: #{gconv_forward.7} parent=0 // pred_check_branch
    %18 = sbr.rel (0) target = $region17
  $region16: #{gconv_forward.7} parent=0 // pred_region
    _
  $region17: #{gconv_forward.7} parent=0 // pred_fallthru
    _
  %v20 = vld [vmem:[%s0] sm:$0xff]
  %v21 = vld [vmem:[%s0 + $0x8] sm:$0xff]
  %v22 = vld [vmem:[%s0 + $0x10] sm:$0xff]
  %v23 = vld [vmem:[%s0 + $0x18] sm:$0xff]
  %v24 = vld [vmem:[%s0 + $0x20] sm:$0xff]
  %v25 = vld [vmem:[%s0 + $0x28] sm:$0xff]
  %v26 = vld [vmem:[%s0 + $0x30] sm:$0xff]
  %v27 = vld [vmem:[%s0 + $0x38] sm:$0xff]
  %v28 = vld [vmem:[%s0 + $0x40] sm:$0xff]
  %v29 = vld [vmem:[%s0 + $0x48] sm:$0xff]
  %v30 = vld [vmem:[%s0 + $0x50] sm:$0xff]
  %v31 = vld [vmem:[%s0 + $0x58] sm:$0xff]
  %v32 = vld [vmem:[%s0 + $0x60] sm:$0xff]
  %v33 = vld [vmem:[%s0 + $0x68] sm:$0xff]
  %v34 = vld [vmem:[%s0 + $0x70] sm:$0xff]
  %v35 = vld [vmem:[%s0 + $0x78] sm:$0xff]
  %v36 = vld [vmem:[%s1] sm:$0x1]
  %v38 = vlaneseq
  %v39 = vshrl.u32 %v38, 7
  %v40 = vsub.s32 0, %v39
  %v41 = vrot.slane %v36, %v40
  %v43 = vmul.f32 %v20, %v41
  %v44 = vmul.f32 %v21, %v41
  %v45 = vmul.f32 %v22, %v41
  %v46 = vmul.f32 %v23, %v41
  %v47 = vmul.f32 %v24, %v41
  %v48 = vmul.f32 %v25, %v41
  %v49 = vmul.f32 %v26, %v41
  %v50 = vmul.f32 %v27, %v41
  %v51 = vmul.f32 %v28, %v41
  %v52 = vmul.f32 %v29, %v41
  %v53 = vmul.f32 %v30, %v41
  %v54 = vmul.f32 %v31, %v41
  %v55 = vmul.f32 %v32, %v41
  %v56 = vmul.f32 %v33, %v41
  %v57 = vmul.f32 %v34, %v41
  %v58 = vmul.f32 %v35, %v41
  %v59 = vld [vmem:[%s2] sm:$0x1]
  %v61 = vlaneseq
  %v62 = vshrl.u32 %v61, 7
  %v63 = vsub.s32 0, %v62
  %v64 = vrot.slane %v59, %v63
  %v66 = vadd.f32 %v43, %v64
  %v67 = vadd.f32 %v44, %v64
  %v68 = vadd.f32 %v45, %v64
  %v69 = vadd.f32 %v46, %v64
  %v70 = vadd.f32 %v47, %v64
  %v71 = vadd.f32 %v48, %v64
  %v72 = vadd.f32 %v49, %v64
  %v73 = vadd.f32 %v50, %v64
  %v74 = vadd.f32 %v51, %v64
  %v75 = vadd.f32 %v52, %v64
  %v76 = vadd.f32 %v53, %v64
  %v77 = vadd.f32 %v54, %v64
  %v78 = vadd.f32 %v55, %v64
  %v79 = vadd.f32 %v56, %v64
  %v80 = vadd.f32 %v57, %v64
  %v81 = vadd.f32 %v58, %v64
  %v82 = vpack.c.bf16 %v67, %v66
  %v83 = vpack.c.bf16 %v69, %v68
  %v84 = vpack.c.bf16 %v71, %v70
  %v85 = vpack.c.bf16 %v73, %v72
  %v86 = vpack.c.bf16 %v75, %v74
  %v87 = vpack.c.bf16 %v77, %v76
  %v88 = vpack.c.bf16 %v79, %v78
  %v89 = vpack.c.bf16 %v81, %v80
  %v98 = vunpack.c.l.b16 %v82
  %v99 = vunpack.c.h.b16 %v82
  %v100 = vunpack.c.l.b16 %v83
  %v101 = vunpack.c.h.b16 %v83
  %v102 = vunpack.c.l.b16 %v84
  %v103 = vunpack.c.h.b16 %v84
  %v104 = vunpack.c.l.b16 %v85
  %v105 = vunpack.c.h.b16 %v85
  %v106 = vunpack.c.l.b16 %v86
  %v107 = vunpack.c.h.b16 %v86
  %v108 = vunpack.c.l.b16 %v87
  %v109 = vunpack.c.h.b16 %v87
  %v110 = vunpack.c.l.b16 %v88
  %v111 = vunpack.c.h.b16 %v88
  %v112 = vunpack.c.l.b16 %v89
  %v113 = vunpack.c.h.b16 %v89
  %v114 = vpack.c.b16 %v98, %v98
  %v115 = vpack.c.b16 %v99, %v99
  %v116 = vpack.c.b16 %v100, %v100
  %v117 = vpack.c.b16 %v101, %v101
  %v118 = vpack.c.b16 %v102, %v102
  %v119 = vpack.c.b16 %v103, %v103
  %v120 = vpack.c.b16 %v104, %v104
  %v121 = vpack.c.b16 %v105, %v105
  %v122 = vpack.c.b16 %v106, %v106
  %v123 = vpack.c.b16 %v107, %v107
  %v124 = vpack.c.b16 %v108, %v108
  %v125 = vpack.c.b16 %v109, %v109
  %v126 = vpack.c.b16 %v110, %v110
  %v127 = vpack.c.b16 %v111, %v111
  %v128 = vpack.c.b16 %v112, %v112
  %v129 = vpack.c.b16 %v113, %v113
  %146 = vst [vmem:[%s4] sm:$0xf] %v114
  %147 = vst [vmem:[%s4 + $0x4] sm:$0xf] %v115
  %148 = vst [vmem:[%s4 + $0x8] sm:$0xf] %v116
  %149 = vst [vmem:[%s4 + $0xc] sm:$0xf] %v117
  %150 = vst [vmem:[%s4 + $0x10] sm:$0xf] %v118
  %151 = vst [vmem:[%s4 + $0x14] sm:$0xf] %v119
  %152 = vst [vmem:[%s4 + $0x18] sm:$0xf] %v120
  %153 = vst [vmem:[%s4 + $0x1c] sm:$0xf] %v121
  %154 = vst [vmem:[%s4 + $0x20] sm:$0xf] %v122
  %155 = vst [vmem:[%s4 + $0x24] sm:$0xf] %v123
  %156 = vst [vmem:[%s4 + $0x28] sm:$0xf] %v124
  %157 = vst [vmem:[%s4 + $0x2c] sm:$0xf] %v125
  %158 = vst [vmem:[%s4 + $0x30] sm:$0xf] %v126
  %159 = vst [vmem:[%s4 + $0x34] sm:$0xf] %v127
  %160 = vst [vmem:[%s4 + $0x38] sm:$0xf] %v128
  %161 = vst [vmem:[%s4 + $0x3c] sm:$0xf] %v129
  %p162 = scmp.eq.s32.totalorder 0, 0
  // Predicated region
  $region18: #{gconv_forward.7} parent=0 // pred_check
    %p163 = pneg %p162
  $region19: #{gconv_forward.7} parent=0 // pred_check_branch
    %165 = sbr.rel (%p163) target = $region21
  $region20: #{gconv_forward.7} parent=0 // pred_region
    %166 = vst [vmem:[%s5] sm:$0xff] 0.0
  $region21: #{gconv_forward.7} parent=0 // pred_fallthru
    _
  %v167 = vld [vmem:[%s5] sm:$0xff]
  %v168 = vld [vmem:[%s3] sm:$0xf]
  %169 = vmatprep.subr.bf16.mxu0 0
  %170 = vmatpush1.bf16.msra.mxu0 %v82
  %171 = vmatprep.subr.bf16.mxu0 0
  %172 = vmatpush1.bf16.msra.mxu0 %v83
  %173 = vmatprep.subr.bf16.mxu0 0
  %174 = vmatpush1.bf16.msra.mxu0 %v84
  %175 = vmatprep.subr.bf16.mxu0 0
  %176 = vmatpush1.bf16.msra.mxu0 %v85
  %177 = vmatprep.subr.bf16.mxu0 0
  %178 = vmatpush1.bf16.msra.mxu0 %v86
  %179 = vmatprep.subr.bf16.mxu0 0
  %180 = vmatpush1.bf16.msra.mxu0 %v87
  %181 = vmatprep.subr.bf16.mxu0 0
  %182 = vmatpush1.bf16.msra.mxu0 %v88
  %183 = vmatprep.subr.bf16.mxu0 0
  %184 = vmatpush1.bf16.msra.mxu0 %v89
  %185 = vmatprep.subr.bf16.mxu0 0
  %186 = vmatpush1.bf16.msra.mxu0 0
  %187 = vmatprep.subr.bf16.mxu0 0
  %188 = vmatpush1.bf16.msra.mxu0 0
  %189 = vmatprep.subr.bf16.mxu0 0
  %190 = vmatpush1.bf16.msra.mxu0 0
  %191 = vmatprep.subr.bf16.mxu0 0
  %192 = vmatpush1.bf16.msra.mxu0 0
  %193 = vmatprep.subr.bf16.mxu0 0
  %194 = vmatpush1.bf16.msra.mxu0 0
  %195 = vmatprep.subr.bf16.mxu0 0
  %196 = vmatpush1.bf16.msra.mxu0 0
  %197 = vmatprep.subr.bf16.mxu0 0
  %198 = vmatpush1.bf16.msra.mxu0 0
  %199 = vmatprep.subr.bf16.mxu0 0
  %200 = vmatpush1.bf16.msra.mxu0 0
  %201 = vmatprep.mubr.bf16.mxu0 0
  %202 = vmatmul.mubr.bf16.gmra.mrb[0].mxu0 %v168
  %v203 = vpop.f32.mrb[0].mxu0
  %v204 = vadd.f32 0.0, %v203
  %v205 = vpop.f32.mrb[0].mxu0
  %v206 = vpop.f32.mrb[0].mxu0
  %v207 = vpop.f32.mrb[0].mxu0
  %208 = vdwg.mxu0
  %v209 = vadd.f32 %v167, %v204
  %210 = vst [vmem:[%s5] sm:$0xff] %v209
  // Predicated region
  $region22: #{gconv_forward.7} parent=0 // pred_check
    _
  $region23: #{gconv_forward.7} parent=0 // pred_check_branch
    %212 = sbr.rel (0) target = $region25
  $region24: #{gconv_forward.7} parent=0 // pred_region
    _
  $region25: #{gconv_forward.7} parent=0 // pred_fallthru
    _
  // Predicated region
  $region26: #{gconv_forward.7} parent=0 // pred_check
    _
  $region27: #{gconv_forward.7} parent=0 // pred_check_branch
    %214 = sbr.rel (0) target = $region29
  $region28: #{gconv_forward.7} parent=0 // pred_region
    _
  $region29: #{gconv_forward.7} parent=0 // pred_fallthru
    _
  // Predicated region
  $region30: #{gconv_forward.7} parent=0 // pred_check
    _
  $region31: #{gconv_forward.7} parent=0 // pred_check_branch
    %216 = sbr.rel (0) target = $region33
  $region32: #{gconv_forward.7} parent=0 // pred_region
    _
  $region33: #{gconv_forward.7} parent=0 // pred_fallthru
    _
  // Predicated region
  $region34: #{gconv_forward.7} parent=0 // pred_check
    _
  $region35: #{gconv_forward.7} parent=0 // pred_check_branch
    %218 = sbr.rel (0) target = $region37
  $region36: #{gconv_forward.7} parent=0 // pred_region
    _
  $region37: #{gconv_forward.7} parent=0 // pred_fallthru
    _

// kernel: gconv_forward.6
$region0: #{gconv_forward.6}
  #allocation0 [shape = 'u32[]', space=smem, size = 0x4, offset = 0x4, fixed_abs, tag = 'smem constant byte address 0x4 - core index']
  #allocation1 [shape = 'u32[144,128]{1,0:T(1,128)}', space=vmem, size = 0x12000, scoped, tag = 'internal scratch']
  #allocation2 [shape = 'f32[128,128]{1,0:T(8,128)}', space=vmem, size = 0x10000, scoped, tag = 'scratch operand']
  #allocation3 [shape = 's32[1]{0}', space=sflag, size = 0x4, scoped, tag = 'scoped memory for gconv_forward.6']
  #allocation4 [shape = 's32[1]{0:T(128)S(6)}', space=smem, size = 0x200, scoped, tag = 'prefetched SMEM operand 0']
  #allocation5 [shape = 's32[1]{0:T(128)S(6)}', space=smem, size = 0x200, scoped, tag = 'prefetched SMEM operand 1']
  %s0 = inlined_call_operand.<no memory space> [shape: s32[1], index: 0, kind: input, shape index: {}]
  %s1 = inlined_call_operand.<no memory space> [shape: s32[1], index: 1, kind: input, shape index: {}]
  %s2 = inlined_call_operand.vmem [shape: f32[128,1], index: 2, kind: input, shape index: {}]
  %s3 = inlined_call_operand.vmem [shape: bf16[128,128], index: 3, kind: input, shape index: {}]
  %s4 = inlined_call_operand.vmem [shape: bf16[128,128], index: 4, kind: input, shape index: {}]
  %s5 = inlined_call_operand.vmem [shape: bf16[128,128], index: 5, kind: input, shape index: {}]
  %s6 = inlined_call_operand.vmem [shape: f32[1,128], index: 6, kind: input, shape index: {}]
  %s7 = inlined_call_operand.vmem [shape: bf16[128,128], index: 7, kind: input, shape index: {}]
  %s8 = inlined_call_operand.vmem [shape: f32[1,128], index: 8, kind: input, shape index: {}]
  %s9 = inlined_call_operand.vmem [shape: f32[128,128], index: 9, kind: output, shape index: {0}]
  %s10 = inlined_call_operand.vmem [shape: f32[8,128], index: 10, kind: output, shape index: {1}]
  %11 = xla_tuple %s9, %s10
  %s12 = sld [smem:[#allocation0]]
  $region58: #{gconv_forward.6} parent=0
    _
  %s14 = ssub.s32 1, %s12
  %s15 = scalar_select 0, %s14, %s12
  %16 = sst [smem:[#allocation4]] %s0
  %17 = sst [smem:[#allocation5]] %s1
  // Predicated region
  $region2: #{gconv_forward.6} parent=0 // pred_check
    _
  $region3: #{gconv_forward.6} parent=0 // pred_check_branch
    %19 = sbr.rel (0) target = $region5
  $region4: #{gconv_forward.6} parent=0 // pred_region
    _
  $region5: #{gconv_forward.6} parent=0 // pred_fallthru
    _
  // Predicated region
  $region6: #{gconv_forward.6} parent=0 // pred_check
    _
  $region7: #{gconv_forward.6} parent=0 // pred_check_branch
    %21 = sbr.rel (0) target = $region9
  $region8: #{gconv_forward.6} parent=0 // pred_region
    %s22 = sadd.s32 0, 0
    %s23 = sld [smem:[#allocation4 + %s22]]
    %p24 = scmp.lt.s32.totalorder %s23, 0
    %s25 = scalar_select %p24, %s23, 0
    %s26 = smul.addr %s25, 4
    %s27 = scalar_lea.vmem %s3, %s26
    %s28 = sadd.s32 0, 0
    %s29 = sld [smem:[#allocation4 + %s28]]
  $region9: #{gconv_forward.6} parent=0 // pred_fallthru
    _
  // Predicated region
  $region10: #{gconv_forward.6} parent=0 // pred_check
    _
  $region11: #{gconv_forward.6} parent=0 // pred_check_branch
    %31 = sbr.rel (0) target = $region13
  $region12: #{gconv_forward.6} parent=0 // pred_region
    %s32 = sadd.s32 0, 0
    %s33 = sld [smem:[#allocation4 + %s32]]
    %s34 = smul.u32 16, %s33
    %p35 = scmp.lt.s32.totalorder %s34, 15
    %s36 = scalar_select %p35, %s34, 15
    %s37 = smul.addr %s36, 4
    %s38 = scalar_lea.vmem %s4, %s37
    %s39 = sadd.s32 0, 0
    %s40 = sld [smem:[#allocation4 + %s39]]
    %s41 = smul.u32 16, %s40
  $region13: #{gconv_forward.6} parent=0 // pred_fallthru
    _
  // Predicated region
  $region14: #{gconv_forward.6} parent=0 // pred_check
    _
  $region15: #{gconv_forward.6} parent=0 // pred_check_branch
    %43 = sbr.rel (0) target = $region17
  $region16: #{gconv_forward.6} parent=0 // pred_region
    _
  $region17: #{gconv_forward.6} parent=0 // pred_fallthru
    _
  // Predicated region
  $region18: #{gconv_forward.6} parent=0 // pred_check
    _
  $region19: #{gconv_forward.6} parent=0 // pred_check_branch
    %45 = sbr.rel (0) target = $region21
  $region20: #{gconv_forward.6} parent=0 // pred_region
    _
  $region21: #{gconv_forward.6} parent=0 // pred_fallthru
    _
  // Predicated region
  $region22: #{gconv_forward.6} parent=0 // pred_check
    _
  $region23: #{gconv_forward.6} parent=0 // pred_check_branch
    %47 = sbr.rel (0) target = $region25
  $region24: #{gconv_forward.6} parent=0 // pred_region
    _
  $region25: #{gconv_forward.6} parent=0 // pred_fallthru
    _
  // Predicated region
  $region26: #{gconv_forward.6} parent=0 // pred_check
    _
  $region27: #{gconv_forward.6} parent=0 // pred_check_branch
    %49 = sbr.rel (0) target = $region29
  $region28: #{gconv_forward.6} parent=0 // pred_region
    _
  $region29: #{gconv_forward.6} parent=0 // pred_fallthru
    _
  %s50 = sadd.s32 0, 0
  %s51 = sld [smem:[#allocation4 + %s50]]
  %p52 = scmp.lt.s32.totalorder %s51, 0
  %s53 = scalar_select %p52, %s51, 0
  %s54 = smul.addr %s53, 4
  %s55 = scalar_lea.vmem %s3, %s54
  %s56 = sadd.s32 0, 0
  %s57 = sld [smem:[#allocation4 + %s56]]
  %s58 = smul.u32 16, %s57
  %p59 = scmp.lt.s32.totalorder %s58, 15
  %s60 = scalar_select %p59, %s58, 15
  %s61 = smul.addr %s60, 4
  %s62 = scalar_lea.vmem %s4, %s61
  %s63 = sadd.s32 0, 0
  %s64 = sld [smem:[#allocation4 + %s63]]
  %p65 = scmp.lt.s32.totalorder %s64, 0
  %s66 = scalar_select %p65, %s64, 0
  %s67 = smul.addr %s66, 4
  %s68 = scalar_lea.vmem %s3, %s67
  %s69 = sadd.s32 0, 0
  %s70 = sld [smem:[#allocation4 + %s69]]
  %s71 = sadd.s32 0, 0
  %s72 = sld [smem:[#allocation4 + %s71]]
  %s73 = smul.u32 16, %s72
  %p74 = scmp.lt.s32.totalorder %s73, 15
  %s75 = scalar_select %p74, %s73, 15
  %s76 = smul.addr %s75, 4
  %s77 = scalar_lea.vmem %s4, %s76
  %s78 = sadd.s32 0, 0
  %s79 = sld [smem:[#allocation4 + %s78]]
  %s80 = smul.u32 16, %s79
  %s82 = sld [smem:[#allocation5]]
  %p83 = scmp.lt.s32.totalorder 0, %s82
  %p84 = scmp.eq.s32.totalorder 0, 0
  // Predicated region
  $region30: #{gconv_forward.6} parent=0 // pred_check
    %p85 = pneg %p84
  $region31: #{gconv_forward.6} parent=0 // pred_check_branch
    %87 = sbr.rel (%p85) target = $region33
  $region32: #{gconv_forward.6} parent=0 // pred_region
    %88 = vst [vmem:[#allocation2] sm:$0xff] 0.0
    %89 = vst [vmem:[#allocation2 + $0x8] sm:$0xff] 0.0
    %90 = vst [vmem:[#allocation2 + $0x10] sm:$0xff] 0.0
    %91 = vst [vmem:[#allocation2 + $0x18] sm:$0xff] 0.0
    %92 = vst [vmem:[#allocation2 + $0x20] sm:$0xff] 0.0
    %93 = vst [vmem:[#allocation2 + $0x28] sm:$0xff] 0.0
    %94 = vst [vmem:[#allocation2 + $0x30] sm:$0xff] 0.0
    %95 = vst [vmem:[#allocation2 + $0x38] sm:$0xff] 0.0
    %96 = vst [vmem:[#allocation2 + $0x40] sm:$0xff] 0.0
    %97 = vst [vmem:[#allocation2 + $0x48] sm:$0xff] 0.0
    %98 = vst [vmem:[#allocation2 + $0x50] sm:$0xff] 0.0
    %99 = vst [vmem:[#allocation2 + $0x58] sm:$0xff] 0.0
    %100 = vst [vmem:[#allocation2 + $0x60] sm:$0xff] 0.0
    %101 = vst [vmem:[#allocation2 + $0x68] sm:$0xff] 0.0
    %102 = vst [vmem:[#allocation2 + $0x70] sm:$0xff] 0.0
    %103 = vst [vmem:[#allocation2 + $0x78] sm:$0xff] 0.0
  $region33: #{gconv_forward.6} parent=0 // pred_fallthru
    _
  // Predicated region
  $region34: #{gconv_forward.6} parent=0 // pred_check
    %p104 = pneg %p83
  $region35: #{gconv_forward.6} parent=0 // pred_check_branch
    %106 = sbr.rel (%p104) target = $region37
  $region36: #{gconv_forward.6} parent=0 // pred_region
    %v107 = vld [vmem:[#allocation2] sm:$0xff]
    %v108 = vld [vmem:[#allocation2 + $0x8] sm:$0xff]
    %v109 = vld [vmem:[#allocation2 + $0x10] sm:$0xff]
    %v110 = vld [vmem:[#allocation2 + $0x18] sm:$0xff]
    %v111 = vld [vmem:[#allocation2 + $0x20] sm:$0xff]
    %v112 = vld [vmem:[#allocation2 + $0x28] sm:$0xff]
    %v113 = vld [vmem:[#allocation2 + $0x30] sm:$0xff]
    %v114 = vld [vmem:[#allocation2 + $0x38] sm:$0xff]
    %v115 = vld [vmem:[#allocation2 + $0x40] sm:$0xff]
    %v116 = vld [vmem:[#allocation2 + $0x48] sm:$0xff]
    %v117 = vld [vmem:[#allocation2 + $0x50] sm:$0xff]
    %v118 = vld [vmem:[#allocation2 + $0x58] sm:$0xff]
    %v119 = vld [vmem:[#allocation2 + $0x60] sm:$0xff]
    %v120 = vld [vmem:[#allocation2 + $0x68] sm:$0xff]
    %v121 = vld [vmem:[#allocation2 + $0x70] sm:$0xff]
    %v122 = vld [vmem:[#allocation2 + $0x78] sm:$0xff]
    %v123 = vld [vmem:[%s68] sm:$0xf]
    %v124 = vld [vmem:[%s68 + $0x4] sm:$0xf]
    %v125 = vld [vmem:[%s68 + $0x8] sm:$0xf]
    %v126 = vld [vmem:[%s68 + $0xc] sm:$0xf]
    %v127 = vld [vmem:[%s68 + $0x10] sm:$0xf]
    %v128 = vld [vmem:[%s68 + $0x14] sm:$0xf]
    %v129 = vld [vmem:[%s68 + $0x18] sm:$0xf]
    %v130 = vld [vmem:[%s68 + $0x1c] sm:$0xf]
    %v131 = vld [vmem:[%s68 + $0x20] sm:$0xf]
    %v132 = vld [vmem:[%s68 + $0x24] sm:$0xf]
    %v133 = vld [vmem:[%s68 + $0x28] sm:$0xf]
    %v134 = vld [vmem:[%s68 + $0x2c] sm:$0xf]
    %v135 = vld [vmem:[%s68 + $0x30] sm:$0xf]
    %v136 = vld [vmem:[%s68 + $0x34] sm:$0xf]
    %v137 = vld [vmem:[%s68 + $0x38] sm:$0xf]
    %v138 = vld [vmem:[%s68 + $0x3c] sm:$0xf]
    %v139 = vld [vmem:[%s77] sm:$0xf]
    %v140 = vld [vmem:[%s77 + $0x4] sm:$0xf]
    %v141 = vld [vmem:[%s77 + $0x8] sm:$0xf]
    %v142 = vld [vmem:[%s77 + $0xc] sm:$0xf]
    %v143 = vld [vmem:[%s77 + $0x10] sm:$0xf]
    %v144 = vld [vmem:[%s77 + $0x14] sm:$0xf]
    %v145 = vld [vmem:[%s77 + $0x18] sm:$0xf]
    %v146 = vld [vmem:[%s77 + $0x1c] sm:$0xf]
    %v147 = vld [vmem:[%s77 + $0x20] sm:$0xf]
    %v148 = vld [vmem:[%s77 + $0x24] sm:$0xf]
    %v149 = vld [vmem:[%s77 + $0x28] sm:$0xf]
    %v150 = vld [vmem:[%s77 + $0x2c] sm:$0xf]
    %v151 = vld [vmem:[%s77 + $0x30] sm:$0xf]
    %v152 = vld [vmem:[%s77 + $0x34] sm:$0xf]
    %v153 = vld [vmem:[%s77 + $0x38] sm:$0xf]
    %v154 = vld [vmem:[%s77 + $0x3c] sm:$0xf]
    %v171 = vunpack.c.l.b16 %v123
    %v172 = vunpack.c.l.b16 %v124
    %v173 = vunpack.c.l.b16 %v125
    %v174 = vunpack.c.l.b16 %v126
    %v175 = vunpack.c.l.b16 %v127
    %v176 = vunpack.c.l.b16 %v128
    %v177 = vunpack.c.l.b16 %v129
    %v178 = vunpack.c.l.b16 %v130
    %v179 = vunpack.c.l.b16 %v131
    %v180 = vunpack.c.l.b16 %v132
    %v181 = vunpack.c.l.b16 %v133
    %v182 = vunpack.c.l.b16 %v134
    %v183 = vunpack.c.l.b16 %v135
    %v184 = vunpack.c.l.b16 %v136
    %v185 = vunpack.c.l.b16 %v137
    %v186 = vunpack.c.l.b16 %v138
    %v187 = vpack.c.b16 %v172, %v171
    %v188 = vpack.c.b16 %v174, %v173
    %v189 = vpack.c.b16 %v176, %v175
    %v190 = vpack.c.b16 %v178, %v177
    %v191 = vpack.c.b16 %v180, %v179
    %v192 = vpack.c.b16 %v182, %v181
    %v193 = vpack.c.b16 %v184, %v183
    %v194 = vpack.c.b16 %v186, %v185
    %v219 = vunpack.c.l.b16 %v139
    %v220 = vunpack.c.l.b16 %v140
    %v221 = vunpack.c.l.b16 %v141
    %v222 = vunpack.c.l.b16 %v142
    %v223 = vunpack.c.l.b16 %v143
    %v224 = vunpack.c.l.b16 %v144
    %v225 = vunpack.c.l.b16 %v145
    %v226 = vunpack.c.l.b16 %v146
    %v227 = vunpack.c.l.b16 %v147
    %v228 = vunpack.c.l.b16 %v148
    %v229 = vunpack.c.l.b16 %v149
    %v230 = vunpack.c.l.b16 %v150
    %v231 = vunpack.c.l.b16 %v151
    %v232 = vunpack.c.l.b16 %v152
    %v233 = vunpack.c.l.b16 %v153
    %v234 = vunpack.c.l.b16 %v154
    %v235 = vpack.c.b16 %v220, %v219
    %v236 = vpack.c.b16 %v222, %v221
    %v237 = vpack.c.b16 %v224, %v223
    %v238 = vpack.c.b16 %v226, %v225
    %v239 = vpack.c.b16 %v228, %v227
    %v240 = vpack.c.b16 %v230, %v229
    %v241 = vpack.c.b16 %v232, %v231
    %v242 = vpack.c.b16 %v234, %v233
    %251 = vmatprep.subr.bf16.mxu0 0
    %252 = vmatpush1.bf16.msra.mxu0 %v235
    %253 = vmatprep.subr.bf16.mxu0 0
    %254 = vmatpush1.bf16.msra.mxu0 %v236
    %255 = vmatprep.subr.bf16.mxu0 0
    %256 = vmatpush1.bf16.msra.mxu0 %v237
    %257 = vmatprep.subr.bf16.mxu0 0
    %258 = vmatpush1.bf16.msra.mxu0 %v238
    %259 = vmatprep.subr.bf16.mxu0 0
    %260 = vmatpush1.bf16.msra.mxu0 %v239
    %261 = vmatprep.subr.bf16.mxu0 0
    %262 = vmatpush1.bf16.msra.mxu0 %v240
    %263 = vmatprep.subr.bf16.mxu0 0
    %264 = vmatpush1.bf16.msra.mxu0 %v241
    %265 = vmatprep.subr.bf16.mxu0 0
    %266 = vmatpush1.bf16.msra.mxu0 %v242
    %267 = vmatprep.subr.bf16.mxu0 0
    %268 = vmatpush1.bf16.msra.mxu0 0
    %269 = vmatprep.subr.bf16.mxu0 0
    %270 = vmatpush1.bf16.msra.mxu0 0
    %271 = vmatprep.subr.bf16.mxu0 0
    %272 = vmatpush1.bf16.msra.mxu0 0
    %273 = vmatprep.subr.bf16.mxu0 0
    %274 = vmatpush1.bf16.msra.mxu0 0
    %275 = vmatprep.subr.bf16.mxu0 0
    %276 = vmatpush1.bf16.msra.mxu0 0
    %277 = vmatprep.subr.bf16.mxu0 0
    %278 = vmatpush1.bf16.msra.mxu0 0
    %279 = vmatprep.subr.bf16.mxu0 0
    %280 = vmatpush1.bf16.msra.mxu0 0
    %281 = vmatprep.subr.bf16.mxu0 0
    %282 = vmatpush1.bf16.msra.mxu0 0
    %283 = vmatprep.mubr.bf16.mxu0 0
    %284 = vmatmul.mubr.bf16.gmra.mrb[0].mxu0 %v187
    %v285 = vpop.f32.mrb[0].mxu0
    %v286 = vadd.f32 0.0, %v285
    %v287 = vpop.f32.mrb[0].mxu0
    %v288 = vpop.f32.mrb[0].mxu0
    %v289 = vadd.f32 0.0, %v288
    %v290 = vpop.f32.mrb[0].mxu0
    %291 = vmatprep.mubr.bf16.mxu0 0
    %292 = vmatmul.mubr.bf16.gmra.mrb[0].mxu0 %v188
    %v293 = vpop.f32.mrb[0].mxu0
    %v294 = vadd.f32 0.0, %v293
    %v295 = vpop.f32.mrb[0].mxu0
    %v296 = vpop.f32.mrb[0].mxu0
    %v297 = vadd.f32 0.0, %v296
    %v298 = vpop.f32.mrb[0].mxu0
    %299 = vmatprep.mubr.bf16.mxu0 0
    %300 = vmatmul.mubr.bf16.gmra.mrb[0].mxu0 %v189
    %v301 = vpop.f32.mrb[0].mxu0
    %v302 = vadd.f32 0.0, %v301
    %v303 = vpop.f32.mrb[0].mxu0
    %v304 = vpop.f32.mrb[0].mxu0
    %v305 = vadd.f32 0.0, %v304
    %v306 = vpop.f32.mrb[0].mxu0
    %307 = vmatprep.mubr.bf16.mxu0 0
    %308 = vmatmul.mubr.bf16.gmra.mrb[0].mxu0 %v190
    %v309 = vpop.f32.mrb[0].mxu0
    %v310 = vadd.f32 0.0, %v309
    %v311 = vpop.f32.mrb[0].mxu0
    %v312 = vpop.f32.mrb[0].mxu0
    %v313 = vadd.f32 0.0, %v312
    %v314 = vpop.f32.mrb[0].mxu0
    %315 = vmatprep.mubr.bf16.mxu0 0
    %316 = vmatmul.mubr.bf16.gmra.mrb[0].mxu0 %v191
    %v317 = vpop.f32.mrb[0].mxu0
    %v318 = vadd.f32 0.0, %v317
    %v319 = vpop.f32.mrb[0].mxu0
    %v320 = vpop.f32.mrb[0].mxu0
    %v321 = vadd.f32 0.0, %v320
    %v322 = vpop.f32.mrb[0].mxu0
    %323 = vmatprep.mubr.bf16.mxu0 0
    %324 = vmatmul.mubr.bf16.gmra.mrb[0].mxu0 %v192
    %v325 = vpop.f32.mrb[0].mxu0
    %v326 = vadd.f32 0.0, %v325
    %v327 = vpop.f32.mrb[0].mxu0
    %v328 = vpop.f32.mrb[0].mxu0
    %v329 = vadd.f32 0.0, %v328
    %v330 = vpop.f32.mrb[0].mxu0
    %331 = vmatprep.mubr.bf16.mxu0 0
    %332 = vmatmul.mubr.bf16.gmra.mrb[0].mxu0 %v193
    %v333 = vpop.f32.mrb[0].mxu0
    %v334 = vadd.f32 0.0, %v333
    %v335 = vpop.f32.mrb[0].mxu0
    %v336 = vpop.f32.mrb[0].mxu0
    %v337 = vadd.f32 0.0, %v336
    %v338 = vpop.f32.mrb[0].mxu0
    %339 = vmatprep.mubr.bf16.mxu0 0
    %340 = vmatmul.mubr.bf16.gmra.mrb[0].mxu0 %v194
    %v341 = vpop.f32.mrb[0].mxu0
    %v342 = vadd.f32 0.0, %v341
    %v343 = vpop.f32.mrb[0].mxu0
    %v344 = vpop.f32.mrb[0].mxu0
    %v345 = vadd.f32 0.0, %v344
    %v346 = vpop.f32.mrb[0].mxu0
    %347 = vdwg.mxu0
    %v348 = vadd.f32 %v107, %v286
    %v349 = vadd.f32 %v108, %v289
    %v350 = vadd.f32 %v109, %v294
    %v351 = vadd.f32 %v110, %v297
    %v352 = vadd.f32 %v111, %v302
    %v353 = vadd.f32 %v112, %v305
    %v354 = vadd.f32 %v113, %v310
    %v355 = vadd.f32 %v114, %v313
    %v356 = vadd.f32 %v115, %v318
    %v357 = vadd.f32 %v116, %v321
    %v358 = vadd.f32 %v117, %v326
    %v359 = vadd.f32 %v118, %v329
    %v360 = vadd.f32 %v119, %v334
    %v361 = vadd.f32 %v120, %v337
    %v362 = vadd.f32 %v121, %v342
    %v363 = vadd.f32 %v122, %v345
    %364 = vst [vmem:[#allocation2] sm:$0xff] %v348
    %365 = vst [vmem:[#allocation2 + $0x8] sm:$0xff] %v349
    %366 = vst [vmem:[#allocation2 + $0x10] sm:$0xff] %v350
    %367 = vst [vmem:[#allocation2 + $0x18] sm:$0xff] %v351
    %368 = vst [vmem:[#allocation2 + $0x20] sm:$0xff] %v352
    %369 = vst [vmem:[#allocation2 + $0x28] sm:$0xff] %v353
    %370 = vst [vmem:[#allocation2 + $0x30] sm:$0xff] %v354
    %371 = vst [vmem:[#allocation2 + $0x38] sm:$0xff] %v355
    %372 = vst [vmem:[#allocation2 + $0x40] sm:$0xff] %v356
    %373 = vst [vmem:[#allocation2 + $0x48] sm:$0xff] %v357
    %374 = vst [vmem:[#allocation2 + $0x50] sm:$0xff] %v358
    %375 = vst [vmem:[#allocation2 + $0x58] sm:$0xff] %v359
    %376 = vst [vmem:[#allocation2 + $0x60] sm:$0xff] %v360
    %377 = vst [vmem:[#allocation2 + $0x68] sm:$0xff] %v361
    %378 = vst [vmem:[#allocation2 + $0x70] sm:$0xff] %v362
    %379 = vst [vmem:[#allocation2 + $0x78] sm:$0xff] %v363
  $region37: #{gconv_forward.6} parent=0 // pred_fallthru
    _
  // Predicated region
  $region38: #{gconv_forward.6} parent=0 // pred_check
    %p380 = pneg %p84
  $region39: #{gconv_forward.6} parent=0 // pred_check_branch
    %382 = sbr.rel (%p380) target = $region41
  $region40: #{gconv_forward.6} parent=0 // pred_region
    %v383 = vld [vmem:[#allocation2] sm:$0xff]
    %v384 = vld [vmem:[#allocation2 + $0x8] sm:$0xff]
    %v385 = vld [vmem:[#allocation2 + $0x10] sm:$0xff]
    %v386 = vld [vmem:[#allocation2 + $0x18] sm:$0xff]
    %v387 = vld [vmem:[#allocation2 + $0x20] sm:$0xff]
    %v388 = vld [vmem:[#allocation2 + $0x28] sm:$0xff]
    %v389 = vld [vmem:[#allocation2 + $0x30] sm:$0xff]
    %v390 = vld [vmem:[#allocation2 + $0x38] sm:$0xff]
    %v391 = vld [vmem:[#allocation2 + $0x40] sm:$0xff]
    %v392 = vld [vmem:[#allocation2 + $0x48] sm:$0xff]
    %v393 = vld [vmem:[#allocation2 + $0x50] sm:$0xff]
    %v394 = vld [vmem:[#allocation2 + $0x58] sm:$0xff]
    %v395 = vld [vmem:[#allocation2 + $0x60] sm:$0xff]
    %v396 = vld [vmem:[#allocation2 + $0x68] sm:$0xff]
    %v397 = vld [vmem:[#allocation2 + $0x70] sm:$0xff]
    %v398 = vld [vmem:[#allocation2 + $0x78] sm:$0xff]
    %v399 = vpack.c.bf16 %v384, %v383
    %v400 = vpack.c.bf16 %v386, %v385
    %v401 = vpack.c.bf16 %v388, %v387
    %v402 = vpack.c.bf16 %v390, %v389
    %v403 = vpack.c.bf16 %v392, %v391
    %v404 = vpack.c.bf16 %v394, %v393
    %v405 = vpack.c.bf16 %v396, %v395
    %v406 = vpack.c.bf16 %v398, %v397
    %v407 = vld [vmem:[%s5] sm:$0xf]
    %v408 = vld [vmem:[%s5 + $0x4] sm:$0xf]
    %v409 = vld [vmem:[%s5 + $0x8] sm:$0xf]
    %v410 = vld [vmem:[%s5 + $0xc] sm:$0xf]
    %v411 = vld [vmem:[%s5 + $0x10] sm:$0xf]
    %v412 = vld [vmem:[%s5 + $0x14] sm:$0xf]
    %v413 = vld [vmem:[%s5 + $0x18] sm:$0xf]
    %v414 = vld [vmem:[%s5 + $0x1c] sm:$0xf]
    %v415 = vld [vmem:[%s5 + $0x20] sm:$0xf]
    %v416 = vld [vmem:[%s5 + $0x24] sm:$0xf]
    %v417 = vld [vmem:[%s5 + $0x28] sm:$0xf]
    %v418 = vld [vmem:[%s5 + $0x2c] sm:$0xf]
    %v419 = vld [vmem:[%s5 + $0x30] sm:$0xf]
    %v420 = vld [vmem:[%s5 + $0x34] sm:$0xf]
    %v421 = vld [vmem:[%s5 + $0x38] sm:$0xf]
    %v422 = vld [vmem:[%s5 + $0x3c] sm:$0xf]
    %v423 = vld [vmem:[%s6] sm:$0x1]
    %v425 = vlaneseq
    %v426 = vshrl.u32 %v425, 7
    %v427 = vsub.s32 0, %v426
    %v428 = vrot.slane %v423, %v427
    %v446 = vunpack.c.l.b16 %v407
    %v447 = vunpack.c.l.b16 %v408
    %v448 = vunpack.c.l.b16 %v409
    %v449 = vunpack.c.l.b16 %v410
    %v450 = vunpack.c.l.b16 %v411
    %v451 = vunpack.c.l.b16 %v412
    %v452 = vunpack.c.l.b16 %v413
    %v453 = vunpack.c.l.b16 %v414
    %v454 = vunpack.c.l.b16 %v415
    %v455 = vunpack.c.l.b16 %v416
    %v456 = vunpack.c.l.b16 %v417
    %v457 = vunpack.c.l.b16 %v418
    %v458 = vunpack.c.l.b16 %v419
    %v459 = vunpack.c.l.b16 %v420
    %v460 = vunpack.c.l.b16 %v421
    %v461 = vunpack.c.l.b16 %v422
    %v462 = vpack.c.b16 %v447, %v446
    %v463 = vpack.c.b16 %v449, %v448
    %v464 = vpack.c.b16 %v451, %v450
    %v465 = vpack.c.b16 %v453, %v452
    %v466 = vpack.c.b16 %v455, %v454
    %v467 = vpack.c.b16 %v457, %v456
    %v468 = vpack.c.b16 %v459, %v458
    %v469 = vpack.c.b16 %v461, %v460
    %478 = vmatprep.subr.bf16.mxu0 0
    %479 = vmatpush1.bf16.msra.mxu0 %v462
    %480 = vmatprep.subr.bf16.mxu0 0
    %481 = vmatpush1.bf16.msra.mxu0 %v463
    %482 = vmatprep.subr.bf16.mxu0 0
    %483 = vmatpush1.bf16.msra.mxu0 %v464
    %484 = vmatprep.subr.bf16.mxu0 0
    %485 = vmatpush1.bf16.msra.mxu0 %v465
    %486 = vmatprep.subr.bf16.mxu0 0
    %487 = vmatpush1.bf16.msra.mxu0 %v466
    %488 = vmatprep.subr.bf16.mxu0 0
    %489 = vmatpush1.bf16.msra.mxu0 %v467
    %490 = vmatprep.subr.bf16.mxu0 0
    %491 = vmatpush1.bf16.msra.mxu0 %v468
    %492 = vmatprep.subr.bf16.mxu0 0
    %493 = vmatpush1.bf16.msra.mxu0 %v469
    %494 = vmatprep.subr.bf16.mxu0 0
    %495 = vmatpush1.bf16.msra.mxu0 0
    %496 = vmatprep.subr.bf16.mxu0 0
    %497 = vmatpush1.bf16.msra.mxu0 0
    %498 = vmatprep.subr.bf16.mxu0 0
    %499 = vmatpush1.bf16.msra.mxu0 0
    %500 = vmatprep.subr.bf16.mxu0 0
    %501 = vmatpush1.bf16.msra.mxu0 0
    %502 = vmatprep.subr.bf16.mxu0 0
    %503 = vmatpush1.bf16.msra.mxu0 0
    %504 = vmatprep.subr.bf16.mxu0 0
    %505 = vmatpush1.bf16.msra.mxu0 0
    %506 = vmatprep.subr.bf16.mxu0 0
    %507 = vmatpush1.bf16.msra.mxu0 0
    %508 = vmatprep.subr.bf16.mxu0 0
    %509 = vmatpush1.bf16.msra.mxu0 0
    %510 = vmatprep.mubr.bf16.mxu0 0
    %511 = vmatmul.mubr.bf16.gmra.mrb[0].mxu0 %v399
    %v512 = vpop.f32.mrb[0].mxu0
    %v513 = vadd.f32 %v428, %v512
    %v514 = vpop.f32.mrb[0].mxu0
    %v515 = vpop.f32.mrb[0].mxu0
    %v516 = vadd.f32 %v428, %v515
    %v517 = vpop.f32.mrb[0].mxu0
    %518 = vmatprep.mubr.bf16.mxu0 0
    %519 = vmatmul.mubr.bf16.gmra.mrb[0].mxu0 %v400
    %v520 = vpop.f32.mrb[0].mxu0
    %v521 = vadd.f32 %v428, %v520
    %v522 = vpop.f32.mrb[0].mxu0
    %v523 = vpop.f32.mrb[0].mxu0
    %v524 = vadd.f32 %v428, %v523
    %v525 = vpop.f32.mrb[0].mxu0
    %526 = vmatprep.mubr.bf16.mxu0 0
    %527 = vmatmul.mubr.bf16.gmra.mrb[0].mxu0 %v401
    %v528 = vpop.f32.mrb[0].mxu0
    %v529 = vadd.f32 %v428, %v528
    %v530 = vpop.f32.mrb[0].mxu0
    %v531 = vpop.f32.mrb[0].mxu0
    %v532 = vadd.f32 %v428, %v531
    %v533 = vpop.f32.mrb[0].mxu0
    %534 = vmatprep.mubr.bf16.mxu0 0
    %535 = vmatmul.mubr.bf16.gmra.mrb[0].mxu0 %v402
    %v536 = vpop.f32.mrb[0].mxu0
    %v537 = vadd.f32 %v428, %v536
    %v538 = vpop.f32.mrb[0].mxu0
    %v539 = vpop.f32.mrb[0].mxu0
    %v540 = vadd.f32 %v428, %v539
    %v541 = vpop.f32.mrb[0].mxu0
    %542 = vmatprep.mubr.bf16.mxu0 0
    %543 = vmatmul.mubr.bf16.gmra.mrb[0].mxu0 %v403
    %v544 = vpop.f32.mrb[0].mxu0
    %v545 = vadd.f32 %v428, %v544
    %v546 = vpop.f32.mrb[0].mxu0
    %v547 = vpop.f32.mrb[0].mxu0
    %v548 = vadd.f32 %v428, %v547
    %v549 = vpop.f32.mrb[0].mxu0
    %550 = vmatprep.mubr.bf16.mxu0 0
    %551 = vmatmul.mubr.bf16.gmra.mrb[0].mxu0 %v404
    %v552 = vpop.f32.mrb[0].mxu0
    %v553 = vadd.f32 %v428, %v552
    %v554 = vpop.f32.mrb[0].mxu0
    %v555 = vpop.f32.mrb[0].mxu0
    %v556 = vadd.f32 %v428, %v555
    %v557 = vpop.f32.mrb[0].mxu0
    %558 = vmatprep.mubr.bf16.mxu0 0
    %559 = vmatmul.mubr.bf16.gmra.mrb[0].mxu0 %v405
    %v560 = vpop.f32.mrb[0].mxu0
    %v561 = vadd.f32 %v428, %v560
    %v562 = vpop.f32.mrb[0].mxu0
    %v563 = vpop.f32.mrb[0].mxu0
    %v564 = vadd.f32 %v428, %v563
    %v565 = vpop.f32.mrb[0].mxu0
    %566 = vmatprep.mubr.bf16.mxu0 0
    %567 = vmatmul.mubr.bf16.gmra.mrb[0].mxu0 %v406
    %v568 = vpop.f32.mrb[0].mxu0
    %v569 = vadd.f32 %v428, %v568
    %v570 = vpop.f32.mrb[0].mxu0
    %v571 = vpop.f32.mrb[0].mxu0
    %v572 = vadd.f32 %v428, %v571
    %v573 = vpop.f32.mrb[0].mxu0
    %574 = vdwg.mxu0
    %v575 = vmax.f32 %v513, 0.0
    %v576 = vmax.f32 %v516, 0.0
    %v577 = vmax.f32 %v521, 0.0
    %v578 = vmax.f32 %v524, 0.0
    %v579 = vmax.f32 %v529, 0.0
    %v580 = vmax.f32 %v532, 0.0
    %v581 = vmax.f32 %v537, 0.0
    %v582 = vmax.f32 %v540, 0.0
    %v583 = vmax.f32 %v545, 0.0
    %v584 = vmax.f32 %v548, 0.0
    %v585 = vmax.f32 %v553, 0.0
    %v586 = vmax.f32 %v556, 0.0
    %v587 = vmax.f32 %v561, 0.0
    %v588 = vmax.f32 %v564, 0.0
    %v589 = vmax.f32 %v569, 0.0
    %v590 = vmax.f32 %v572, 0.0
    %v591 = vpack.c.bf16 %v576, %v575
    %v592 = vpack.c.bf16 %v578, %v577
    %v593 = vpack.c.bf16 %v580, %v579
    %v594 = vpack.c.bf16 %v582, %v581
    %v595 = vpack.c.bf16 %v584, %v583
    %v596 = vpack.c.bf16 %v586, %v585
    %v597 = vpack.c.bf16 %v588, %v587
    %v598 = vpack.c.bf16 %v590, %v589
    %v599 = vld [vmem:[%s7] sm:$0xf]
    %v600 = vld [vmem:[%s7 + $0x4] sm:$0xf]
    %v601 = vld [vmem:[%s7 + $0x8] sm:$0xf]
    %v602 = vld [vmem:[%s7 + $0xc] sm:$0xf]
    %v603 = vld [vmem:[%s7 + $0x10] sm:$0xf]
    %v604 = vld [vmem:[%s7 + $0x14] sm:$0xf]
    %v605 = vld [vmem:[%s7 + $0x18] sm:$0xf]
    %v606 = vld [vmem:[%s7 + $0x1c] sm:$0xf]
    %v607 = vld [vmem:[%s7 + $0x20] sm:$0xf]
    %v608 = vld [vmem:[%s7 + $0x24] sm:$0xf]
    %v609 = vld [vmem:[%s7 + $0x28] sm:$0xf]
    %v610 = vld [vmem:[%s7 + $0x2c] sm:$0xf]
    %v611 = vld [vmem:[%s7 + $0x30] sm:$0xf]
    %v612 = vld [vmem:[%s7 + $0x34] sm:$0xf]
    %v613 = vld [vmem:[%s7 + $0x38] sm:$0xf]
    %v614 = vld [vmem:[%s7 + $0x3c] sm:$0xf]
    %v615 = vld [vmem:[%s8] sm:$0x1]
    %v617 = vlaneseq
    %v618 = vshrl.u32 %v617, 7
    %v619 = vsub.s32 0, %v618
    %v620 = vrot.slane %v615, %v619
    %v638 = vunpack.c.l.b16 %v599
    %v639 = vunpack.c.l.b16 %v600
    %v640 = vunpack.c.l.b16 %v601
    %v641 = vunpack.c.l.b16 %v602
    %v642 = vunpack.c.l.b16 %v603
    %v643 = vunpack.c.l.b16 %v604
    %v644 = vunpack.c.l.b16 %v605
    %v645 = vunpack.c.l.b16 %v606
    %v646 = vunpack.c.l.b16 %v607
    %v647 = vunpack.c.l.b16 %v608
    %v648 = vunpack.c.l.b16 %v609
    %v649 = vunpack.c.l.b16 %v610
    %v650 = vunpack.c.l.b16 %v611
    %v651 = vunpack.c.l.b16 %v612
    %v652 = vunpack.c.l.b16 %v613
    %v653 = vunpack.c.l.b16 %v614
    %v654 = vpack.c.b16 %v639, %v638
    %v655 = vpack.c.b16 %v641, %v640
    %v656 = vpack.c.b16 %v643, %v642
    %v657 = vpack.c.b16 %v645, %v644
    %v658 = vpack.c.b16 %v647, %v646
    %v659 = vpack.c.b16 %v649, %v648
    %v660 = vpack.c.b16 %v651, %v650
    %v661 = vpack.c.b16 %v653, %v652
    %670 = vmatprep.subr.bf16.mxu0 0
    %671 = vmatpush1.bf16.msra.mxu0 %v654
    %672 = vmatprep.subr.bf16.mxu0 0
    %673 = vmatpush1.bf16.msra.mxu0 %v655
    %674 = vmatprep.subr.bf16.mxu0 0
    %675 = vmatpush1.bf16.msra.mxu0 %v656
    %676 = vmatprep.subr.bf16.mxu0 0
    %677 = vmatpush1.bf16.msra.mxu0 %v657
    %678 = vmatprep.subr.bf16.mxu0 0
    %679 = vmatpush1.bf16.msra.mxu0 %v658
    %680 = vmatprep.subr.bf16.mxu0 0
    %681 = vmatpush1.bf16.msra.mxu0 %v659
    %682 = vmatprep.subr.bf16.mxu0 0
    %683 = vmatpush1.bf16.msra.mxu0 %v660
    %684 = vmatprep.subr.bf16.mxu0 0
    %685 = vmatpush1.bf16.msra.mxu0 %v661
    %686 = vmatprep.subr.bf16.mxu0 0
    %687 = vmatpush1.bf16.msra.mxu0 0
    %688 = vmatprep.subr.bf16.mxu0 0
    %689 = vmatpush1.bf16.msra.mxu0 0
    %690 = vmatprep.subr.bf16.mxu0 0
    %691 = vmatpush1.bf16.msra.mxu0 0
    %692 = vmatprep.subr.bf16.mxu0 0
    %693 = vmatpush1.bf16.msra.mxu0 0
    %694 = vmatprep.subr.bf16.mxu0 0
    %695 = vmatpush1.bf16.msra.mxu0 0
    %696 = vmatprep.subr.bf16.mxu0 0
    %697 = vmatpush1.bf16.msra.mxu0 0
    %698 = vmatprep.subr.bf16.mxu0 0
    %699 = vmatpush1.bf16.msra.mxu0 0
    %700 = vmatprep.subr.bf16.mxu0 0
    %701 = vmatpush1.bf16.msra.mxu0 0
    %702 = vmatprep.mubr.bf16.mxu0 0
    %703 = vmatmul.mubr.bf16.gmra.mrb[0].mxu0 %v591
    %v704 = vpop.f32.mrb[0].mxu0
    %v705 = vadd.f32 %v620, %v704
    %v706 = vpop.f32.mrb[0].mxu0
    %v707 = vpop.f32.mrb[0].mxu0
    %v708 = vadd.f32 %v620, %v707
    %v709 = vpop.f32.mrb[0].mxu0
    %710 = vmatprep.mubr.bf16.mxu0 0
    %711 = vmatmul.mubr.bf16.gmra.mrb[0].mxu0 %v592
    %v712 = vpop.f32.mrb[0].mxu0
    %v713 = vadd.f32 %v620, %v712
    %v714 = vpop.f32.mrb[0].mxu0
    %v715 = vpop.f32.mrb[0].mxu0
    %v716 = vadd.f32 %v620, %v715
    %v717 = vpop.f32.mrb[0].mxu0
    %718 = vmatprep.mubr.bf16.mxu0 0
    %719 = vmatmul.mubr.bf16.gmra.mrb[0].mxu0 %v593
    %v720 = vpop.f32.mrb[0].mxu0
    %v721 = vadd.f32 %v620, %v720
    %v722 = vpop.f32.mrb[0].mxu0
    %v723 = vpop.f32.mrb[0].mxu0
    %v724 = vadd.f32 %v620, %v723
    %v725 = vpop.f32.mrb[0].mxu0
    %726 = vmatprep.mubr.bf16.mxu0 0
    %727 = vmatmul.mubr.bf16.gmra.mrb[0].mxu0 %v594
    %v728 = vpop.f32.mrb[0].mxu0
    %v729 = vadd.f32 %v620, %v728
    %v730 = vpop.f32.mrb[0].mxu0
    %v731 = vpop.f32.mrb[0].mxu0
    %v732 = vadd.f32 %v620, %v731
    %v733 = vpop.f32.mrb[0].mxu0
    %734 = vmatprep.mubr.bf16.mxu0 0
    %735 = vmatmul.mubr.bf16.gmra.mrb[0].mxu0 %v595
    %v736 = vpop.f32.mrb[0].mxu0
    %v737 = vadd.f32 %v620, %v736
    %v738 = vpop.f32.mrb[0].mxu0
    %v739 = vpop.f32.mrb[0].mxu0
    %v740 = vadd.f32 %v620, %v739
    %v741 = vpop.f32.mrb[0].mxu0
    %742 = vmatprep.mubr.bf16.mxu0 0
    %743 = vmatmul.mubr.bf16.gmra.mrb[0].mxu0 %v596
    %v744 = vpop.f32.mrb[0].mxu0
    %v745 = vadd.f32 %v620, %v744
    %v746 = vpop.f32.mrb[0].mxu0
    %v747 = vpop.f32.mrb[0].mxu0
    %v748 = vadd.f32 %v620, %v747
    %v749 = vpop.f32.mrb[0].mxu0
    %750 = vmatprep.mubr.bf16.mxu0 0
    %751 = vmatmul.mubr.bf16.gmra.mrb[0].mxu0 %v597
    %v752 = vpop.f32.mrb[0].mxu0
    %v753 = vadd.f32 %v620, %v752
    %v754 = vpop.f32.mrb[0].mxu0
    %v755 = vpop.f32.mrb[0].mxu0
    %v756 = vadd.f32 %v620, %v755
    %v757 = vpop.f32.mrb[0].mxu0
    %758 = vmatprep.mubr.bf16.mxu0 0
    %759 = vmatmul.mubr.bf16.gmra.mrb[0].mxu0 %v598
    %v760 = vpop.f32.mrb[0].mxu0
    %v761 = vadd.f32 %v620, %v760
    %v762 = vpop.f32.mrb[0].mxu0
    %v763 = vpop.f32.mrb[0].mxu0
    %v764 = vadd.f32 %v620, %v763
    %v765 = vpop.f32.mrb[0].mxu0
    %766 = vdwg.mxu0
    %v767 = vmax.f32 %v705, 0.0
    %v768 = vmax.f32 %v708, 0.0
    %v769 = vmax.f32 %v713, 0.0
    %v770 = vmax.f32 %v716, 0.0
    %v771 = vmax.f32 %v721, 0.0
    %v772 = vmax.f32 %v724, 0.0
    %v773 = vmax.f32 %v729, 0.0
    %v774 = vmax.f32 %v732, 0.0
    %v775 = vmax.f32 %v737, 0.0
    %v776 = vmax.f32 %v740, 0.0
    %v777 = vmax.f32 %v745, 0.0
    %v778 = vmax.f32 %v748, 0.0
    %v779 = vmax.f32 %v753, 0.0
    %v780 = vmax.f32 %v756, 0.0
    %v781 = vmax.f32 %v761, 0.0
    %v782 = vmax.f32 %v764, 0.0
    %v783 = vld [vmem:[%s2] sm:$0xff]
    %v784 = vld [vmem:[%s2 + $0x8] sm:$0xff]
    %v785 = vld [vmem:[%s2 + $0x10] sm:$0xff]
    %v786 = vld [vmem:[%s2 + $0x18] sm:$0xff]
    %v787 = vld [vmem:[%s2 + $0x20] sm:$0xff]
    %v788 = vld [vmem:[%s2 + $0x28] sm:$0xff]
    %v789 = vld [vmem:[%s2 + $0x30] sm:$0xff]
    %v790 = vld [vmem:[%s2 + $0x38] sm:$0xff]
    %v791 = vld [vmem:[%s2 + $0x40] sm:$0xff]
    %v792 = vld [vmem:[%s2 + $0x48] sm:$0xff]
    %v793 = vld [vmem:[%s2 + $0x50] sm:$0xff]
    %v794 = vld [vmem:[%s2 + $0x58] sm:$0xff]
    %v795 = vld [vmem:[%s2 + $0x60] sm:$0xff]
    %v796 = vld [vmem:[%s2 + $0x68] sm:$0xff]
    %v797 = vld [vmem:[%s2 + $0x70] sm:$0xff]
    %v798 = vld [vmem:[%s2 + $0x78] sm:$0xff]
    %800 = vset.pattern.permute.xlu0 0
    %801 = vperm.xlu0 %800, %v783
    %v802 = vpop.permute.xlu0 %801
    %805 = vset.pattern.permute.xlu0 0
    %806 = vperm.xlu0 %805, %v784
    %v807 = vpop.permute.xlu0 %806
    %810 = vset.pattern.permute.xlu0 0
    %811 = vperm.xlu0 %810, %v785
    %v812 = vpop.permute.xlu0 %811
    %815 = vset.pattern.permute.xlu0 0
    %816 = vperm.xlu0 %815, %v786
    %v817 = vpop.permute.xlu0 %816
    %820 = vset.pattern.permute.xlu0 0
    %821 = vperm.xlu0 %820, %v787
    %v822 = vpop.permute.xlu0 %821
    %825 = vset.pattern.permute.xlu0 0
    %826 = vperm.xlu0 %825, %v788
    %v827 = vpop.permute.xlu0 %826
    %830 = vset.pattern.permute.xlu0 0
    %831 = vperm.xlu0 %830, %v789
    %v832 = vpop.permute.xlu0 %831
    %835 = vset.pattern.permute.xlu0 0
    %836 = vperm.xlu0 %835, %v790
    %v837 = vpop.permute.xlu0 %836
    %840 = vset.pattern.permute.xlu0 0
    %841 = vperm.xlu0 %840, %v791
    %v842 = vpop.permute.xlu0 %841
    %845 = vset.pattern.permute.xlu0 0
    %846 = vperm.xlu0 %845, %v792
    %v847 = vpop.permute.xlu0 %846
    %850 = vset.pattern.permute.xlu0 0
    %851 = vperm.xlu0 %850, %v793
    %v852 = vpop.permute.xlu0 %851
    %855 = vset.pattern.permute.xlu0 0
    %856 = vperm.xlu0 %855, %v794
    %v857 = vpop.permute.xlu0 %856
    %860 = vset.pattern.permute.xlu0 0
    %861 = vperm.xlu0 %860, %v795
    %v862 = vpop.permute.xlu0 %861
    %865 = vset.pattern.permute.xlu0 0
    %866 = vperm.xlu0 %865, %v796
    %v867 = vpop.permute.xlu0 %866
    %870 = vset.pattern.permute.xlu0 0
    %871 = vperm.xlu0 %870, %v797
    %v872 = vpop.permute.xlu0 %871
    %875 = vset.pattern.permute.xlu0 0
    %876 = vperm.xlu0 %875, %v798
    %v877 = vpop.permute.xlu0 %876
    %v879 = vmul.f32 %v767, %v802
    %v880 = vmul.f32 %v768, %v807
    %v881 = vmul.f32 %v769, %v812
    %v882 = vmul.f32 %v770, %v817
    %v883 = vmul.f32 %v771, %v822
    %v884 = vmul.f32 %v772, %v827
    %v885 = vmul.f32 %v773, %v832
    %v886 = vmul.f32 %v774, %v837
    %v887 = vmul.f32 %v775, %v842
    %v888 = vmul.f32 %v776, %v847
    %v889 = vmul.f32 %v777, %v852
    %v890 = vmul.f32 %v778, %v857
    %v891 = vmul.f32 %v779, %v862
    %v892 = vmul.f32 %v780, %v867
    %v893 = vmul.f32 %v781, %v872
    %v894 = vmul.f32 %v782, %v877
    %895 = vst [vmem:[%s9] sm:$0xff] %v879
    %896 = vst [vmem:[%s9 + $0x8] sm:$0xff] %v880
    %897 = vst [vmem:[%s9 + $0x10] sm:$0xff] %v881
    %898 = vst [vmem:[%s9 + $0x18] sm:$0xff] %v882
    %899 = vst [vmem:[%s9 + $0x20] sm:$0xff] %v883
    %900 = vst [vmem:[%s9 + $0x28] sm:$0xff] %v884
    %901 = vst [vmem:[%s9 + $0x30] sm:$0xff] %v885
    %902 = vst [vmem:[%s9 + $0x38] sm:$0xff] %v886
    %903 = vst [vmem:[%s9 + $0x40] sm:$0xff] %v887
    %904 = vst [vmem:[%s9 + $0x48] sm:$0xff] %v888
    %905 = vst [vmem:[%s9 + $0x50] sm:$0xff] %v889
    %906 = vst [vmem:[%s9 + $0x58] sm:$0xff] %v890
    %907 = vst [vmem:[%s9 + $0x60] sm:$0xff] %v891
    %908 = vst [vmem:[%s9 + $0x68] sm:$0xff] %v892
    %909 = vst [vmem:[%s9 + $0x70] sm:$0xff] %v893
    %910 = vst [vmem:[%s9 + $0x78] sm:$0xff] %v894
    %v911 = vadd.f32 %v879, %v880
    %v912 = vadd.f32 %v911, %v881
    %v913 = vadd.f32 %v912, %v882
    %v914 = vadd.f32 %v913, %v883
    %v915 = vadd.f32 %v914, %v884
    %v916 = vadd.f32 %v915, %v885
    %v917 = vadd.f32 %v916, %v886
    %v918 = vadd.f32 %v917, %v887
    %v919 = vadd.f32 %v918, %v888
    %v920 = vadd.f32 %v919, %v889
    %v921 = vadd.f32 %v920, %v890
    %v922 = vadd.f32 %v921, %v891
    %v923 = vadd.f32 %v922, %v892
    %v924 = vadd.f32 %v923, %v893
    %v925 = vadd.f32 %v924, %v894
    %v926 = vrot.slane %v925, 4
    %v927 = vadd.f32 %v925, %v926
    %v928 = vrot.slane %v927, 2
    %v929 = vadd.f32 %v927, %v928
    %v930 = vrot.slane %v929, 1
    %v931 = vadd.f32 %v929, %v930
    %932 = vst [vmem:[%s10] sm:$0x1] %v931
    %v933 = vmul.f32 %v879, %v879
    %v934 = vmul.f32 %v880, %v880
    %v935 = vmul.f32 %v881, %v881
    %v936 = vmul.f32 %v882, %v882
    %v937 = vmul.f32 %v883, %v883
    %v938 = vmul.f32 %v884, %v884
    %v939 = vmul.f32 %v885, %v885
    %v940 = vmul.f32 %v886, %v886
    %v941 = vmul.f32 %v887, %v887
    %v942 = vmul.f32 %v888, %v888
    %v943 = vmul.f32 %v889, %v889
    %v944 = vmul.f32 %v890, %v890
    %v945 = vmul.f32 %v891, %v891
    %v946 = vmul.f32 %v892, %v892
    %v947 = vmul.f32 %v893, %v893
    %v948 = vmul.f32 %v894, %v894
    %v949 = vadd.f32 %v933, %v934
    %v950 = vadd.f32 %v949, %v935
    %v951 = vadd.f32 %v950, %v936
    %v952 = vadd.f32 %v951, %v937
    %v953 = vadd.f32 %v952, %v938
    %v954 = vadd.f32 %v953, %v939
    %v955 = vadd.f32 %v954, %v940
    %v956 = vadd.f32 %v955, %v941
    %v957 = vadd.f32 %v956, %v942
    %v958 = vadd.f32 %v957, %v943
    %v959 = vadd.f32 %v958, %v944
    %v960 = vadd.f32 %v959, %v945
    %v961 = vadd.f32 %v960, %v946
    %v962 = vadd.f32 %v961, %v947
    %v963 = vadd.f32 %v962, %v948
    %v964 = vrot.slane %v963, 4
    %v965 = vadd.f32 %v963, %v964
    %v966 = vrot.slane %v965, 2
    %v967 = vadd.f32 %v965, %v966
    %v968 = vrot.slane %v967, 1
    %v969 = vadd.f32 %v967, %v968
    %970 = vst [vmem:[%s10 + $0x1] sm:$0x1] %v969
  $region41: #{gconv_forward.6} parent=0 // pred_fallthru
    _
  // Predicated region
  $region42: #{gconv_forward.6} parent=0 // pred_check
    _
  $region43: #{gconv_forward.6} parent=0 // pred_check_branch
    %972 = sbr.rel (0) target = $region45
  $region44: #{gconv_forward.6} parent=0 // pred_region
    _
  $region45: #{gconv_forward.6} parent=0 // pred_fallthru
    _
  // Predicated region
  $region46: #{gconv_forward.6} parent=0 // pred_check
    _
  $region47: #{gconv_forward.6} parent=0 // pred_check_branch
    %974 = sbr.rel (0) target = $region49
  $region48: #{gconv_forward.6} parent=0 // pred_region
    _
  $region49: #{gconv_forward.6} parent=0 // pred_fallthru
    _
  // Predicated region
  $region50: #{gconv_forward.6} parent=0 // pred_check
    _
  $region51: #{gconv_forward.6} parent=0 // pred_check_branch
    %976 = sbr.rel (0) target = $region53
  $region52: #{gconv_forward.6} parent=0 // pred_region
    _
  $region53: #{gconv_forward.6} parent=0 // pred_fallthru
    _
  // Predicated region
  $region54: #{gconv_forward.6} parent=0 // pred_check
    _
  $region55: #{gconv_forward.6} parent=0 // pred_check_branch
    %978 = sbr.rel (0) target = $region57
  $region56: #{gconv_forward.6} parent=0 // pred_region
    _
  $region57: #{gconv_forward.6} parent=0 // pred_fallthru
    _

</llo_original>
